<compile_context>
chip_gen: v6e
topology: v6e:2x2x1
jax: 0.10.0
libtpu: 0.0.40
codegen_flags: <defaults>
</compile_context>

<pallas_src>
import jax
import jax.numpy as jnp
import numpy as np
from jax import lax
from jax.experimental import pallas as pl
from jax.experimental.pallas import tpu as pltpu

THRESH = 0.1
STAT_LANES = 128      # lane-padded stats row: [pos_sum, pos_cnt, total_sum, 0...]


# ----------------------------- Pallas kernel --------------------------------
def _mse_ohem_kernel(lg_ref, la_ref, lx_ref, ly_ref,
                     pg_ref, pa_ref, px_ref, py_ref,
                     ng_ref, na_ref, nx_ref, ny_ref,
                     sg_ref, sa_ref, sx_ref, sy_ref):
    j = pl.program_id(1)                      # reduction step along the N axis

    labels = (lg_ref, la_ref, lx_ref, ly_ref)
    preds = (pg_ref, pa_ref, px_ref, py_ref)
    negs = (ng_ref, na_ref, nx_ref, ny_ref)
    stats = (sg_ref, sa_ref, sx_ref, sy_ref)

    block_rows = lg_ref.shape[0]
    lane = lax.broadcasted_iota(jnp.int32, (block_rows, STAT_LANES), 1)

    for l_ref, p_ref, n_ref, s_ref in zip(labels, preds, negs, stats):
        label = l_ref[...].astype(jnp.float32)
        pred = p_ref[...].astype(jnp.float32)
        diff = pred - label
        loss = diff * diff                     # nn.MSELoss(reduce=False)

        pos_b = label >= THRESH
        pos_f = pos_b.astype(jnp.float32)

        # Negative-masked loss map: positives knocked out with 0.0 (loss >= 0,
        # so the injected zeros never displace a real negative in the top-k).
        n_ref[...] = jnp.where(pos_b, 0.0, loss)

        # Three per-row (cross-lane) reductions per tile; neg stats are derived
        # downstream (neg_sum = total - pos, neg_cnt = N - pos_cnt).
        pos_sum = jnp.sum(loss * pos_f, axis=1, keepdims=True)   # (rows, 1)
        pos_cnt = jnp.sum(pos_f, axis=1, keepdims=True)
        tot_sum = jnp.sum(loss, axis=1, keepdims=True)

        contrib = (jnp.where(lane == 0, pos_sum, 0.0)
                   + jnp.where(lane == 1, pos_cnt, 0.0)
                   + jnp.where(lane == 2, tot_sum, 0.0))

        # Stats output block index is (i, 0) for every j -> resident accumulator.
        @pl.when(j == 0)
        def _(s_ref=s_ref, contrib=contrib):
            s_ref[...] = contrib

        @pl.when(j > 0)
        def _(s_ref=s_ref, contrib=contrib):
            s_ref[...] = s_ref[...] + contrib


# --------------------------- block-size heuristics ---------------------------
def _vmem_budget_and_limit():
    """Generation-aware (budget_for_double_buffered_working_set, vmem_limit)."""
    try:
        cap = int(pltpu.get_tpu_info().vmem_capacity_bytes)
    except Exception:                      # pragma: no cover - conservative default
        cap = 64 << 20                     # assume the smallest generation (v7x)
    budget = min(max(cap // 4, 8 << 20), 24 << 20)   # v7x: 16 MiB, v5e/v6e: 24 MiB
    vmem_limit = min(cap // 2, 64 << 20)             # v7x: 32 MiB, v5e/v6e: 64 MiB
    return budget, vmem_limit


def _pick_blocks(B, N, in_bytes, budget_bytes):
    """Choose (block_rows, block_n) satisfying the (8, 128) constraint whose
    double-buffered footprint fits `budget_bytes`.  Never silently returns an
    over-budget full-extent block: if rows can't shrink (no multiple-of-8
    divisor), the N axis is shrunk instead."""
    # Rows: divisor of B that is a multiple of 8, or B itself (full extent).
    row_divs = [d for d in range(B, 0, -1) if B % d == 0 and d % 8 == 0]
    row_cands = ([d for d in row_divs if B // d >= 2]      # >=2 parallel steps (v7x)
                 + [d for d in row_divs if B // d < 2]
                 + [B])
    seen = set()
    row_cands = [d for d in row_cands if not (d in seen or seen.add(d))]

    # Lanes: divisor of N that is a multiple of 128, or N itself (full extent).
    n_cands = [d for d in range(N, 0, -1) if N % d == 0 and d % 128 == 0]
    if not n_cands:
        n_cands = [N]

    def step_bytes(br, bn):
        per_elem = 8 * in_bytes + 4 * 4          # 8 input tiles + 4 f32 neg tiles
        return 2 * br * (bn * per_elem + 4 * STAT_LANES * 4)   # x2 double buffer

    fallback = None
    for br in row_cands:
        for bn in n_cands:                        # largest block_n first
            if step_bytes(br, bn) <= budget_bytes:
                return br, bn
        fallback = (br, n_cands[-1])
    # Nothing fits: smallest legal block.
    # TODO(synk): add a cdiv-tail + row mask for enormous B where even this overflows.
    return fallback


# ------------------------------ pallas_call wrapper ---------------------------
def mse_ohem_fused(labels, preds):
    """labels/preds: lists of four (B, N) arrays.  Returns
    (neg_maps: 4 x (B, N) f32, stats: 4 x (B, STAT_LANES) f32) where
    stats[:, :3] = [pos_sum, pos_cnt, total_sum]."""
    B, N = labels[0].shape
    in_bytes = max(x.dtype.itemsize for x in labels + preds)
    budget, vmem_limit = _vmem_budget_and_limit()
    block_rows, block_n = _pick_blocks(B, N, in_bytes, budget)
    grid = (B // block_rows, N // block_n)

    map_spec = pl.BlockSpec((block_rows, block_n), lambda i, j: (i, j))
    stat_spec = pl.BlockSpec((block_rows, STAT_LANES), lambda i, j: (i, 0))

    out_shape = tuple([jax.ShapeDtypeStruct((B, N), jnp.float32)] * 4
                      + [jax.ShapeDtypeStruct((B, STAT_LANES), jnp.float32)] * 4)
    out_specs = tuple([map_spec] * 4 + [stat_spec] * 4)

    bytes_accessed = (8 * in_bytes + 4 * 4) * B * N + 4 * B * STAT_LANES * 4
    cost = pl.CostEstimate(flops=10 * 4 * B * N,
                           transcendentals=0,
                           bytes_accessed=bytes_accessed)

    outs = pl.pallas_call(
        _mse_ohem_kernel,
        out_shape=out_shape,
        grid=grid,
        in_specs=[map_spec] * 8,
        out_specs=out_specs,
        compiler_params=pltpu.CompilerParams(
            dimension_semantics=("parallel", "arbitrary"),
            vmem_limit_bytes=vmem_limit),
        cost_estimate=cost,
    )(*labels, *preds)
    return outs[:4], outs[4:]


# ------------------------------- JAX glue ------------------------------------
def _ohem_image_loss(neg_map, stats, N):
    """Per-map OHEM loss, summed over the batch (matches single_image_loss)."""
    pos_sum = stats[:, 0]
    pos_cnt = stats[:, 1]
    tot_sum = stats[:, 2]
    neg_sum = tot_sum - pos_sum
    neg_cnt = jnp.float32(N) - pos_cnt

    # One batched descending sort + prefix sum.  Positives were zero-filled in
    # the kernel, so they sit at the tail and contribute 0 to every prefix.
    # TODO(synk): replace with a streaming radix/threshold top-k select.
    neg_sorted = -jnp.sort(-neg_map, axis=1)
    neg_cumsum = jnp.cumsum(neg_sorted, axis=1)

    pos_cnt_i = pos_cnt.astype(jnp.int32)
    neg_cnt_i = neg_cnt.astype(jnp.int32)
    k3 = 3 * pos_cnt_i

    pos_mean = pos_sum / jnp.maximum(pos_cnt, 1.0)

    k3_idx = jnp.clip(k3 - 1, 0, N - 1)
    topk_neg_sum = jnp.take_along_axis(neg_cumsum, k3_idx[:, None], axis=1)[:, 0]
    topk_neg_mean = topk_neg_sum / jnp.maximum(k3.astype(jnp.float32), 1.0)
    all_neg_mean = neg_sum / jnp.maximum(neg_cnt, 1.0)
    neg_contrib = jnp.where(
        neg_cnt_i == 0, 0.0,
        jnp.where(neg_cnt_i < k3, all_neg_mean, topk_neg_mean))

    # positive_pixel == 0 branch: mean of the top-500 losses of the whole image
    # (neg_map == plain loss map in that case).
    # TODO(synk): torch.topk(x, 500) raises when N < 500; here k is clamped to N.
    k500 = min(500, N)
    top500_mean = neg_cumsum[:, k500 - 1] / float(k500)

    per_image = jnp.where(pos_cnt_i > 0, pos_mean + neg_contrib, top500_mean)
    return per_image.sum()


def maploss_forward(gh_label, gah_label, ori_x, ori_y,
                    p_gh, p_gah, p_ori_x, p_ori_y, ori_lambda):
    B, H, W = gh_label.shape
    N = H * W
    assert N <= (1 << 24), "f32 pos_cnt is exact only up to 2^24 pixels per map"

    # Contiguous reshape -> no HBM copy (unlike the previous jnp.stack concat).
    labels = [x.reshape(B, N) for x in (gh_label, gah_label, ori_x, ori_y)]
    preds = [x.reshape(B, N) for x in (p_gh, p_gah, p_ori_x, p_ori_y)]

    neg_maps, stats = mse_ohem_fused(labels, preds)

    char_loss = _ohem_image_loss(neg_maps[0], stats[0], N)
    affi_loss = _ohem_image_loss(neg_maps[1], stats[1], N)
    orix_loss = _ohem_image_loss(neg_maps[2], stats[2], N)
    oriy_loss = _ohem_image_loss(neg_maps[3], stats[3], N)

    return (char_loss / B + affi_loss / B
            + (orix_loss / B + oriy_loss / B) * ori_lambda)


# ------------------------- pure numpy reference ------------------------------
def _ref_single_image_loss(pred, label):
    pred = np.asarray(pred, np.float64)
    label = np.asarray(label, np.float64)
    B = pred.shape[0]
    pre_loss = ((pred - label) ** 2).reshape(B, -1)
    lab = label.reshape(B, -1)
    total = 0.0
    for i in range(B):
        pos = pre_loss[i][lab[i] >= 0.1]
        neg = pre_loss[i][lab[i] < 0.1]
        if len(pos) != 0:
            total += pos.mean()
            if len(neg) == 0:
                continue
            elif len(neg) < 3 * len(pos):
                total += neg.mean()
            else:
                k = 3 * len(pos)
                total += np.sort(neg)[::-1][:k].mean()
        else:
            k = min(500, pre_loss[i].shape[0])
            total += np.sort(pre_loss[i])[::-1][:k].mean()
    return total


def _ref_maploss(gh, gah, ox, oy, p_gh, p_gah, p_ox, p_oy, lam):
    B = gh.shape[0]
    return (_ref_single_image_loss(p_gh, gh) / B
            + _ref_single_image_loss(p_gah, gah) / B
            + (_ref_single_image_loss(p_ox, ox) / B
               + _ref_single_image_loss(p_oy, oy) / B) * lam)


# --------------------------------- main ---------------------------------------
if __name__ == "__main__":
    key = jax.random.PRNGKey(0)
    B, H, W = 2, 32, 32
    ori_lambda = 1.0
    ks = jax.random.split(key, 12)

    # Labels chosen to exercise all OHEM branches:
    #  gh_label : sparse positives -> top-k negative branch
    #  gah_label: dense positives  -> all-negative-mean branch
    #  ori_x    : sparse positives -> top-k negative branch
    #  ori_y    : all below 0.1    -> zero-positive / top-500 branch
    gh_label = jax.random.uniform(ks[0], (B, H, W), jnp.float32) * \
        (jax.random.uniform(ks[1], (B, H, W)) < 0.2).astype(jnp.float32)
    gah_label = jax.random.uniform(ks[2], (B, H, W), jnp.float32)
    ori_x = jax.random.uniform(ks[3], (B, H, W), jnp.float32) * \
        (jax.random.uniform(ks[4], (B, H, W)) < 0.2).astype(jnp.float32)
    ori_y = jax.random.uniform(ks[5], (B, H, W), jnp.float32) * 0.05

    p_gh = jax.random.uniform(ks[6], (B, H, W), jnp.float32)
    p_gah = jax.random.uniform(ks[7], (B, H, W), jnp.float32)
    p_ori_x = jax.random.uniform(ks[8], (B, H, W), jnp.float32)
    p_ori_y = jax.random.uniform(ks[9], (B, H, W), jnp.float32)

    out = maploss_forward(gh_label, gah_label, ori_x, ori_y,
                          p_gh, p_gah, p_ori_x, p_ori_y, ori_lambda)
    out = jax.block_until_ready(out)

    ref = _ref_maploss(np.asarray(gh_label), np.asarray(gah_label),
                       np.asarray(ori_x), np.asarray(ori_y),
                       np.asarray(p_gh), np.asarray(p_gah),
                       np.asarray(p_ori_x), np.asarray(p_ori_y), ori_lambda)

    assert np.isfinite(float(out))
    np.testing.assert_allclose(float(out), ref, rtol=2e-4, atol=1e-5)
    print("KERNEL_OK")
</pallas_src>

<mosaic_0001>
module attributes {stable_mosaic.version = 11 : i64} {
  func.func @_mse_ohem_kernel(%arg0: i32, %arg1: i32, %arg2: memref<2x1024xf32, #tpu.memory_space<vmem>>, %arg3: memref<2x1024xf32, #tpu.memory_space<vmem>>, %arg4: memref<2x1024xf32, #tpu.memory_space<vmem>>, %arg5: memref<2x1024xf32, #tpu.memory_space<vmem>>, %arg6: memref<2x1024xf32, #tpu.memory_space<vmem>>, %arg7: memref<2x1024xf32, #tpu.memory_space<vmem>>, %arg8: memref<2x1024xf32, #tpu.memory_space<vmem>>, %arg9: memref<2x1024xf32, #tpu.memory_space<vmem>>, %arg10: memref<2x1024xf32, #tpu.memory_space<vmem>>, %arg11: memref<2x1024xf32, #tpu.memory_space<vmem>>, %arg12: memref<2x1024xf32, #tpu.memory_space<vmem>>, %arg13: memref<2x1024xf32, #tpu.memory_space<vmem>>, %arg14: memref<2x128xf32, #tpu.memory_space<vmem>>, %arg15: memref<2x128xf32, #tpu.memory_space<vmem>>, %arg16: memref<2x128xf32, #tpu.memory_space<vmem>>, %arg17: memref<2x128xf32, #tpu.memory_space<vmem>>) attributes {dimension_semantics = [#tpu.dimension_semantics<parallel>, #tpu.dimension_semantics<arbitrary>], iteration_bounds = array<i64: 1, 1>, scalar_prefetch = 0 : i64, scratch_operands = 0 : i64, tpu.core_type = #tpu.core_type<tc>, window_params = [{transform_indices = @transform_0, window_bounds = array<i64: 2, 1024>}, {transform_indices = @transform_1, window_bounds = array<i64: 2, 1024>}, {transform_indices = @transform_2, window_bounds = array<i64: 2, 1024>}, {transform_indices = @transform_3, window_bounds = array<i64: 2, 1024>}, {transform_indices = @transform_4, window_bounds = array<i64: 2, 1024>}, {transform_indices = @transform_5, window_bounds = array<i64: 2, 1024>}, {transform_indices = @transform_6, window_bounds = array<i64: 2, 1024>}, {transform_indices = @transform_7, window_bounds = array<i64: 2, 1024>}, {transform_indices = @transform_8, window_bounds = array<i64: 2, 1024>}, {transform_indices = @transform_9, window_bounds = array<i64: 2, 1024>}, {transform_indices = @transform_10, window_bounds = array<i64: 2, 1024>}, {transform_indices = @transform_11, window_bounds = array<i64: 2, 1024>}, {transform_indices = @transform_12, window_bounds = array<i64: 2, 128>}, {transform_indices = @transform_13, window_bounds = array<i64: 2, 128>}, {transform_indices = @transform_14, window_bounds = array<i64: 2, 128>}, {transform_indices = @transform_15, window_bounds = array<i64: 2, 128>}]} {
    %0 = tpu.iota {dimensions = array<i32: 1>} : vector<2x128xi32>
    %c0 = arith.constant 0 : index
    %c0_0 = arith.constant 0 : index
    %1 = vector.load %arg2[%c0, %c0_0] : memref<2x1024xf32, #tpu.memory_space<vmem>>, vector<2x1024xf32>
    %c0_1 = arith.constant 0 : index
    %c0_2 = arith.constant 0 : index
    %2 = vector.load %arg6[%c0_1, %c0_2] : memref<2x1024xf32, #tpu.memory_space<vmem>>, vector<2x1024xf32>
    %3 = arith.subf %2, %1 : vector<2x1024xf32>
    %4 = arith.mulf %3, %3 : vector<2x1024xf32>
    %cst = arith.constant 1.000000e-01 : f32
    %5 = vector.broadcast %cst : f32 to vector<2x1024xf32>
    %6 = arith.cmpf oge, %1, %5 : vector<2x1024xf32>
    %7 = arith.extui %6 : vector<2x1024xi1> to vector<2x1024xi32>
    %8 = arith.sitofp %7 : vector<2x1024xi32> to vector<2x1024xf32>
    %cst_3 = arith.constant 0.000000e+00 : f32
    %9 = vector.broadcast %cst_3 : f32 to vector<2x1024xf32>
    %10 = arith.select %6, %9, %4 : vector<2x1024xi1>, vector<2x1024xf32>
    %c0_4 = arith.constant 0 : index
    %c0_5 = arith.constant 0 : index
    %11 = vector.load %arg10[%c0_4, %c0_5] : memref<2x1024xf32, #tpu.memory_space<vmem>>, vector<2x1024xf32>
    tpu.vector_store %arg10[%c0_4, %c0_5], %10 {strides = array<i32>} : memref<2x1024xf32, #tpu.memory_space<vmem>>, vector<2x1024xf32>,
    %12 = arith.mulf %4, %8 : vector<2x1024xf32>
    %cst_6 = arith.constant dense<0.000000e+00> : vector<2xf32>
    %13 = vector.multi_reduction <add>, %12, %cst_6 [1] : vector<2x1024xf32> to vector<2xf32>
    %14 = vector.shape_cast %13 : vector<2xf32> to vector<2x1xf32>
    %cst_7 = arith.constant dense<0.000000e+00> : vector<2xf32>
    %15 = vector.multi_reduction <add>, %8, %cst_7 [1] : vector<2x1024xf32> to vector<2xf32>
    %16 = vector.shape_cast %15 : vector<2xf32> to vector<2x1xf32>
    %cst_8 = arith.constant dense<0.000000e+00> : vector<2xf32>
    %17 = vector.multi_reduction <add>, %4, %cst_8 [1] : vector<2x1024xf32> to vector<2xf32>
    %18 = vector.shape_cast %17 : vector<2xf32> to vector<2x1xf32>
    %c0_i32 = arith.constant 0 : i32
    %19 = vector.broadcast %c0_i32 : i32 to vector<2x128xi32>
    %20 = arith.cmpi eq, %0, %19 : vector<2x128xi32>
    %cst_9 = arith.constant 0.000000e+00 : f32
    %21 = vector.shape_cast %14 : vector<2x1xf32> to vector<2x1xf32>
    %22 = vector.broadcast %21 : vector<2x1xf32> to vector<2x128xf32>
    %23 = vector.broadcast %cst_9 : f32 to vector<2x128xf32>
    %24 = arith.select %20, %22, %23 : vector<2x128xi1>, vector<2x128xf32>
    %c1_i32 = arith.constant 1 : i32
    %25 = vector.broadcast %c1_i32 : i32 to vector<2x128xi32>
    %26 = arith.cmpi eq, %0, %25 : vector<2x128xi32>
    %cst_10 = arith.constant 0.000000e+00 : f32
    %27 = vector.shape_cast %16 : vector<2x1xf32> to vector<2x1xf32>
    %28 = vector.broadcast %27 : vector<2x1xf32> to vector<2x128xf32>
    %29 = vector.broadcast %cst_10 : f32 to vector<2x128xf32>
    %30 = arith.select %26, %28, %29 : vector<2x128xi1>, vector<2x128xf32>
    %31 = arith.addf %24, %30 : vector<2x128xf32>
    %c2_i32 = arith.constant 2 : i32
    %32 = vector.broadcast %c2_i32 : i32 to vector<2x128xi32>
    %33 = arith.cmpi eq, %0, %32 : vector<2x128xi32>
    %cst_11 = arith.constant 0.000000e+00 : f32
    %34 = vector.shape_cast %18 : vector<2x1xf32> to vector<2x1xf32>
    %35 = vector.broadcast %34 : vector<2x1xf32> to vector<2x128xf32>
    %36 = vector.broadcast %cst_11 : f32 to vector<2x128xf32>
    %37 = arith.select %33, %35, %36 : vector<2x128xi1>, vector<2x128xf32>
    %38 = arith.addf %31, %37 : vector<2x128xf32>
    %c0_i32_12 = arith.constant 0 : i32
    %39 = arith.cmpi eq, %arg1, %c0_i32_12 : i32
    %40 = arith.extui %39 : i1 to i32
    %c0_i32_13 = arith.constant 0 : i32
    %41 = arith.cmpi ne, %40, %c0_i32_13 : i32
    scf.if %41 {
      %c0_79 = arith.constant 0 : index
      %c0_80 = arith.constant 0 : index
      %177 = vector.load %arg14[%c0_79, %c0_80] : memref<2x128xf32, #tpu.memory_space<vmem>>, vector<2x128xf32>
      tpu.vector_store %arg14[%c0_79, %c0_80], %38 {strides = array<i32>} : memref<2x128xf32, #tpu.memory_space<vmem>>, vector<2x128xf32>,
    } else {
    }
    %c0_i32_14 = arith.constant 0 : i32
    %42 = arith.cmpi sgt, %arg1, %c0_i32_14 : i32
    %43 = arith.extui %42 : i1 to i32
    %c0_i32_15 = arith.constant 0 : i32
    %44 = arith.cmpi ne, %43, %c0_i32_15 : i32
    scf.if %44 {
      %c0_79 = arith.constant 0 : index
      %c0_80 = arith.constant 0 : index
      %177 = vector.load %arg14[%c0_79, %c0_80] : memref<2x128xf32, #tpu.memory_space<vmem>>, vector<2x128xf32>
      %178 = arith.addf %177, %38 : vector<2x128xf32>
      %c0_81 = arith.constant 0 : index
      %c0_82 = arith.constant 0 : index
      %179 = vector.load %arg14[%c0_81, %c0_82] : memref<2x128xf32, #tpu.memory_space<vmem>>, vector<2x128xf32>
      tpu.vector_store %arg14[%c0_81, %c0_82], %178 {strides = array<i32>} : memref<2x128xf32, #tpu.memory_space<vmem>>, vector<2x128xf32>,
    } else {
    }
    %c0_16 = arith.constant 0 : index
    %c0_17 = arith.constant 0 : index
    %45 = vector.load %arg3[%c0_16, %c0_17] : memref<2x1024xf32, #tpu.memory_space<vmem>>, vector<2x1024xf32>
    %c0_18 = arith.constant 0 : index
    %c0_19 = arith.constant 0 : index
    %46 = vector.load %arg7[%c0_18, %c0_19] : memref<2x1024xf32, #tpu.memory_space<vmem>>, vector<2x1024xf32>
    %47 = arith.subf %46, %45 : vector<2x1024xf32>
    %48 = arith.mulf %47, %47 : vector<2x1024xf32>
    %cst_20 = arith.constant 1.000000e-01 : f32
    %49 = vector.broadcast %cst_20 : f32 to vector<2x1024xf32>
    %50 = arith.cmpf oge, %45, %49 : vector<2x1024xf32>
    %51 = arith.extui %50 : vector<2x1024xi1> to vector<2x1024xi32>
    %52 = arith.sitofp %51 : vector<2x1024xi32> to vector<2x1024xf32>
    %cst_21 = arith.constant 0.000000e+00 : f32
    %53 = vector.broadcast %cst_21 : f32 to vector<2x1024xf32>
    %54 = arith.select %50, %53, %48 : vector<2x1024xi1>, vector<2x1024xf32>
    %c0_22 = arith.constant 0 : index
    %c0_23 = arith.constant 0 : index
    %55 = vector.load %arg11[%c0_22, %c0_23] : memref<2x1024xf32, #tpu.memory_space<vmem>>, vector<2x1024xf32>
    tpu.vector_store %arg11[%c0_22, %c0_23], %54 {strides = array<i32>} : memref<2x1024xf32, #tpu.memory_space<vmem>>, vector<2x1024xf32>,
    %56 = arith.mulf %48, %52 : vector<2x1024xf32>
    %cst_24 = arith.constant dense<0.000000e+00> : vector<2xf32>
    %57 = vector.multi_reduction <add>, %56, %cst_24 [1] : vector<2x1024xf32> to vector<2xf32>
    %58 = vector.shape_cast %57 : vector<2xf32> to vector<2x1xf32>
    %cst_25 = arith.constant dense<0.000000e+00> : vector<2xf32>
    %59 = vector.multi_reduction <add>, %52, %cst_25 [1] : vector<2x1024xf32> to vector<2xf32>
    %60 = vector.shape_cast %59 : vector<2xf32> to vector<2x1xf32>
    %cst_26 = arith.constant dense<0.000000e+00> : vector<2xf32>
    %61 = vector.multi_reduction <add>, %48, %cst_26 [1] : vector<2x1024xf32> to vector<2xf32>
    %62 = vector.shape_cast %61 : vector<2xf32> to vector<2x1xf32>
    %c0_i32_27 = arith.constant 0 : i32
    %63 = vector.broadcast %c0_i32_27 : i32 to vector<2x128xi32>
    %64 = arith.cmpi eq, %0, %63 : vector<2x128xi32>
    %cst_28 = arith.constant 0.000000e+00 : f32
    %65 = vector.shape_cast %58 : vector<2x1xf32> to vector<2x1xf32>
    %66 = vector.broadcast %65 : vector<2x1xf32> to vector<2x128xf32>
    %67 = vector.broadcast %cst_28 : f32 to vector<2x128xf32>
    %68 = arith.select %64, %66, %67 : vector<2x128xi1>, vector<2x128xf32>
    %c1_i32_29 = arith.constant 1 : i32
    %69 = vector.broadcast %c1_i32_29 : i32 to vector<2x128xi32>
    %70 = arith.cmpi eq, %0, %69 : vector<2x128xi32>
    %cst_30 = arith.constant 0.000000e+00 : f32
    %71 = vector.shape_cast %60 : vector<2x1xf32> to vector<2x1xf32>
    %72 = vector.broadcast %71 : vector<2x1xf32> to vector<2x128xf32>
    %73 = vector.broadcast %cst_30 : f32 to vector<2x128xf32>
    %74 = arith.select %70, %72, %73 : vector<2x128xi1>, vector<2x128xf32>
    %75 = arith.addf %68, %74 : vector<2x128xf32>
    %c2_i32_31 = arith.constant 2 : i32
    %76 = vector.broadcast %c2_i32_31 : i32 to vector<2x128xi32>
    %77 = arith.cmpi eq, %0, %76 : vector<2x128xi32>
    %cst_32 = arith.constant 0.000000e+00 : f32
    %78 = vector.shape_cast %62 : vector<2x1xf32> to vector<2x1xf32>
    %79 = vector.broadcast %78 : vector<2x1xf32> to vector<2x128xf32>
    %80 = vector.broadcast %cst_32 : f32 to vector<2x128xf32>
    %81 = arith.select %77, %79, %80 : vector<2x128xi1>, vector<2x128xf32>
    %82 = arith.addf %75, %81 : vector<2x128xf32>
    %c0_i32_33 = arith.constant 0 : i32
    %83 = arith.cmpi eq, %arg1, %c0_i32_33 : i32
    %84 = arith.extui %83 : i1 to i32
    %c0_i32_34 = arith.constant 0 : i32
    %85 = arith.cmpi ne, %84, %c0_i32_34 : i32
    scf.if %85 {
      %c0_79 = arith.constant 0 : index
      %c0_80 = arith.constant 0 : index
      %177 = vector.load %arg15[%c0_79, %c0_80] : memref<2x128xf32, #tpu.memory_space<vmem>>, vector<2x128xf32>
      tpu.vector_store %arg15[%c0_79, %c0_80], %82 {strides = array<i32>} : memref<2x128xf32, #tpu.memory_space<vmem>>, vector<2x128xf32>,
    } else {
    }
    %c0_i32_35 = arith.constant 0 : i32
    %86 = arith.cmpi sgt, %arg1, %c0_i32_35 : i32
    %87 = arith.extui %86 : i1 to i32
    %c0_i32_36 = arith.constant 0 : i32
    %88 = arith.cmpi ne, %87, %c0_i32_36 : i32
    scf.if %88 {
      %c0_79 = arith.constant 0 : index
      %c0_80 = arith.constant 0 : index
      %177 = vector.load %arg15[%c0_79, %c0_80] : memref<2x128xf32, #tpu.memory_space<vmem>>, vector<2x128xf32>
      %178 = arith.addf %177, %82 : vector<2x128xf32>
      %c0_81 = arith.constant 0 : index
      %c0_82 = arith.constant 0 : index
      %179 = vector.load %arg15[%c0_81, %c0_82] : memref<2x128xf32, #tpu.memory_space<vmem>>, vector<2x128xf32>
      tpu.vector_store %arg15[%c0_81, %c0_82], %178 {strides = array<i32>} : memref<2x128xf32, #tpu.memory_space<vmem>>, vector<2x128xf32>,
    } else {
    }
    %c0_37 = arith.constant 0 : index
    %c0_38 = arith.constant 0 : index
    %89 = vector.load %arg4[%c0_37, %c0_38] : memref<2x1024xf32, #tpu.memory_space<vmem>>, vector<2x1024xf32>
    %c0_39 = arith.constant 0 : index
    %c0_40 = arith.constant 0 : index
    %90 = vector.load %arg8[%c0_39, %c0_40] : memref<2x1024xf32, #tpu.memory_space<vmem>>, vector<2x1024xf32>
    %91 = arith.subf %90, %89 : vector<2x1024xf32>
    %92 = arith.mulf %91, %91 : vector<2x1024xf32>
    %cst_41 = arith.constant 1.000000e-01 : f32
    %93 = vector.broadcast %cst_41 : f32 to vector<2x1024xf32>
    %94 = arith.cmpf oge, %89, %93 : vector<2x1024xf32>
    %95 = arith.extui %94 : vector<2x1024xi1> to vector<2x1024xi32>
    %96 = arith.sitofp %95 : vector<2x1024xi32> to vector<2x1024xf32>
    %cst_42 = arith.constant 0.000000e+00 : f32
    %97 = vector.broadcast %cst_42 : f32 to vector<2x1024xf32>
    %98 = arith.select %94, %97, %92 : vector<2x1024xi1>, vector<2x1024xf32>
    %c0_43 = arith.constant 0 : index
    %c0_44 = arith.constant 0 : index
    %99 = vector.load %arg12[%c0_43, %c0_44] : memref<2x1024xf32, #tpu.memory_space<vmem>>, vector<2x1024xf32>
    tpu.vector_store %arg12[%c0_43, %c0_44], %98 {strides = array<i32>} : memref<2x1024xf32, #tpu.memory_space<vmem>>, vector<2x1024xf32>,
    %100 = arith.mulf %92, %96 : vector<2x1024xf32>
    %cst_45 = arith.constant dense<0.000000e+00> : vector<2xf32>
    %101 = vector.multi_reduction <add>, %100, %cst_45 [1] : vector<2x1024xf32> to vector<2xf32>
    %102 = vector.shape_cast %101 : vector<2xf32> to vector<2x1xf32>
    %cst_46 = arith.constant dense<0.000000e+00> : vector<2xf32>
    %103 = vector.multi_reduction <add>, %96, %cst_46 [1] : vector<2x1024xf32> to vector<2xf32>
    %104 = vector.shape_cast %103 : vector<2xf32> to vector<2x1xf32>
    %cst_47 = arith.constant dense<0.000000e+00> : vector<2xf32>
    %105 = vector.multi_reduction <add>, %92, %cst_47 [1] : vector<2x1024xf32> to vector<2xf32>
    %106 = vector.shape_cast %105 : vector<2xf32> to vector<2x1xf32>
    %c0_i32_48 = arith.constant 0 : i32
    %107 = vector.broadcast %c0_i32_48 : i32 to vector<2x128xi32>
    %108 = arith.cmpi eq, %0, %107 : vector<2x128xi32>
    %cst_49 = arith.constant 0.000000e+00 : f32
    %109 = vector.shape_cast %102 : vector<2x1xf32> to vector<2x1xf32>
    %110 = vector.broadcast %109 : vector<2x1xf32> to vector<2x128xf32>
    %111 = vector.broadcast %cst_49 : f32 to vector<2x128xf32>
    %112 = arith.select %108, %110, %111 : vector<2x128xi1>, vector<2x128xf32>
    %c1_i32_50 = arith.constant 1 : i32
    %113 = vector.broadcast %c1_i32_50 : i32 to vector<2x128xi32>
    %114 = arith.cmpi eq, %0, %113 : vector<2x128xi32>
    %cst_51 = arith.constant 0.000000e+00 : f32
    %115 = vector.shape_cast %104 : vector<2x1xf32> to vector<2x1xf32>
    %116 = vector.broadcast %115 : vector<2x1xf32> to vector<2x128xf32>
    %117 = vector.broadcast %cst_51 : f32 to vector<2x128xf32>
    %118 = arith.select %114, %116, %117 : vector<2x128xi1>, vector<2x128xf32>
    %119 = arith.addf %112, %118 : vector<2x128xf32>
    %c2_i32_52 = arith.constant 2 : i32
    %120 = vector.broadcast %c2_i32_52 : i32 to vector<2x128xi32>
    %121 = arith.cmpi eq, %0, %120 : vector<2x128xi32>
    %cst_53 = arith.constant 0.000000e+00 : f32
    %122 = vector.shape_cast %106 : vector<2x1xf32> to vector<2x1xf32>
    %123 = vector.broadcast %122 : vector<2x1xf32> to vector<2x128xf32>
    %124 = vector.broadcast %cst_53 : f32 to vector<2x128xf32>
    %125 = arith.select %121, %123, %124 : vector<2x128xi1>, vector<2x128xf32>
    %126 = arith.addf %119, %125 : vector<2x128xf32>
    %c0_i32_54 = arith.constant 0 : i32
    %127 = arith.cmpi eq, %arg1, %c0_i32_54 : i32
    %128 = arith.extui %127 : i1 to i32
    %c0_i32_55 = arith.constant 0 : i32
    %129 = arith.cmpi ne, %128, %c0_i32_55 : i32
    scf.if %129 {
      %c0_79 = arith.constant 0 : index
      %c0_80 = arith.constant 0 : index
      %177 = vector.load %arg16[%c0_79, %c0_80] : memref<2x128xf32, #tpu.memory_space<vmem>>, vector<2x128xf32>
      tpu.vector_store %arg16[%c0_79, %c0_80], %126 {strides = array<i32>} : memref<2x128xf32, #tpu.memory_space<vmem>>, vector<2x128xf32>,
    } else {
    }
    %c0_i32_56 = arith.constant 0 : i32
    %130 = arith.cmpi sgt, %arg1, %c0_i32_56 : i32
    %131 = arith.extui %130 : i1 to i32
    %c0_i32_57 = arith.constant 0 : i32
    %132 = arith.cmpi ne, %131, %c0_i32_57 : i32
    scf.if %132 {
      %c0_79 = arith.constant 0 : index
      %c0_80 = arith.constant 0 : index
      %177 = vector.load %arg16[%c0_79, %c0_80] : memref<2x128xf32, #tpu.memory_space<vmem>>, vector<2x128xf32>
      %178 = arith.addf %177, %126 : vector<2x128xf32>
      %c0_81 = arith.constant 0 : index
      %c0_82 = arith.constant 0 : index
      %179 = vector.load %arg16[%c0_81, %c0_82] : memref<2x128xf32, #tpu.memory_space<vmem>>, vector<2x128xf32>
      tpu.vector_store %arg16[%c0_81, %c0_82], %178 {strides = array<i32>} : memref<2x128xf32, #tpu.memory_space<vmem>>, vector<2x128xf32>,
    } else {
    }
    %c0_58 = arith.constant 0 : index
    %c0_59 = arith.constant 0 : index
    %133 = vector.load %arg5[%c0_58, %c0_59] : memref<2x1024xf32, #tpu.memory_space<vmem>>, vector<2x1024xf32>
    %c0_60 = arith.constant 0 : index
    %c0_61 = arith.constant 0 : index
    %134 = vector.load %arg9[%c0_60, %c0_61] : memref<2x1024xf32, #tpu.memory_space<vmem>>, vector<2x1024xf32>
    %135 = arith.subf %134, %133 : vector<2x1024xf32>
    %136 = arith.mulf %135, %135 : vector<2x1024xf32>
    %cst_62 = arith.constant 1.000000e-01 : f32
    %137 = vector.broadcast %cst_62 : f32 to vector<2x1024xf32>
    %138 = arith.cmpf oge, %133, %137 : vector<2x1024xf32>
    %139 = arith.extui %138 : vector<2x1024xi1> to vector<2x1024xi32>
    %140 = arith.sitofp %139 : vector<2x1024xi32> to vector<2x1024xf32>
    %cst_63 = arith.constant 0.000000e+00 : f32
    %141 = vector.broadcast %cst_63 : f32 to vector<2x1024xf32>
    %142 = arith.select %138, %141, %136 : vector<2x1024xi1>, vector<2x1024xf32>
    %c0_64 = arith.constant 0 : index
    %c0_65 = arith.constant 0 : index
    %143 = vector.load %arg13[%c0_64, %c0_65] : memref<2x1024xf32, #tpu.memory_space<vmem>>, vector<2x1024xf32>
    tpu.vector_store %arg13[%c0_64, %c0_65], %142 {strides = array<i32>} : memref<2x1024xf32, #tpu.memory_space<vmem>>, vector<2x1024xf32>,
    %144 = arith.mulf %136, %140 : vector<2x1024xf32>
    %cst_66 = arith.constant dense<0.000000e+00> : vector<2xf32>
    %145 = vector.multi_reduction <add>, %144, %cst_66 [1] : vector<2x1024xf32> to vector<2xf32>
    %146 = vector.shape_cast %145 : vector<2xf32> to vector<2x1xf32>
    %cst_67 = arith.constant dense<0.000000e+00> : vector<2xf32>
    %147 = vector.multi_reduction <add>, %140, %cst_67 [1] : vector<2x1024xf32> to vector<2xf32>
    %148 = vector.shape_cast %147 : vector<2xf32> to vector<2x1xf32>
    %cst_68 = arith.constant dense<0.000000e+00> : vector<2xf32>
    %149 = vector.multi_reduction <add>, %136, %cst_68 [1] : vector<2x1024xf32> to vector<2xf32>
    %150 = vector.shape_cast %149 : vector<2xf32> to vector<2x1xf32>
    %c0_i32_69 = arith.constant 0 : i32
    %151 = vector.broadcast %c0_i32_69 : i32 to vector<2x128xi32>
    %152 = arith.cmpi eq, %0, %151 : vector<2x128xi32>
    %cst_70 = arith.constant 0.000000e+00 : f32
    %153 = vector.shape_cast %146 : vector<2x1xf32> to vector<2x1xf32>
    %154 = vector.broadcast %153 : vector<2x1xf32> to vector<2x128xf32>
    %155 = vector.broadcast %cst_70 : f32 to vector<2x128xf32>
    %156 = arith.select %152, %154, %155 : vector<2x128xi1>, vector<2x128xf32>
    %c1_i32_71 = arith.constant 1 : i32
    %157 = vector.broadcast %c1_i32_71 : i32 to vector<2x128xi32>
    %158 = arith.cmpi eq, %0, %157 : vector<2x128xi32>
    %cst_72 = arith.constant 0.000000e+00 : f32
    %159 = vector.shape_cast %148 : vector<2x1xf32> to vector<2x1xf32>
    %160 = vector.broadcast %159 : vector<2x1xf32> to vector<2x128xf32>
    %161 = vector.broadcast %cst_72 : f32 to vector<2x128xf32>
    %162 = arith.select %158, %160, %161 : vector<2x128xi1>, vector<2x128xf32>
    %163 = arith.addf %156, %162 : vector<2x128xf32>
    %c2_i32_73 = arith.constant 2 : i32
    %164 = vector.broadcast %c2_i32_73 : i32 to vector<2x128xi32>
    %165 = arith.cmpi eq, %0, %164 : vector<2x128xi32>
    %cst_74 = arith.constant 0.000000e+00 : f32
    %166 = vector.shape_cast %150 : vector<2x1xf32> to vector<2x1xf32>
    %167 = vector.broadcast %166 : vector<2x1xf32> to vector<2x128xf32>
    %168 = vector.broadcast %cst_74 : f32 to vector<2x128xf32>
    %169 = arith.select %165, %167, %168 : vector<2x128xi1>, vector<2x128xf32>
    %170 = arith.addf %163, %169 : vector<2x128xf32>
    %c0_i32_75 = arith.constant 0 : i32
    %171 = arith.cmpi eq, %arg1, %c0_i32_75 : i32
    %172 = arith.extui %171 : i1 to i32
    %c0_i32_76 = arith.constant 0 : i32
    %173 = arith.cmpi ne, %172, %c0_i32_76 : i32
    scf.if %173 {
      %c0_79 = arith.constant 0 : index
      %c0_80 = arith.constant 0 : index
      %177 = vector.load %arg17[%c0_79, %c0_80] : memref<2x128xf32, #tpu.memory_space<vmem>>, vector<2x128xf32>
      tpu.vector_store %arg17[%c0_79, %c0_80], %170 {strides = array<i32>} : memref<2x128xf32, #tpu.memory_space<vmem>>, vector<2x128xf32>,
    } else {
    }
    %c0_i32_77 = arith.constant 0 : i32
    %174 = arith.cmpi sgt, %arg1, %c0_i32_77 : i32
    %175 = arith.extui %174 : i1 to i32
    %c0_i32_78 = arith.constant 0 : i32
    %176 = arith.cmpi ne, %175, %c0_i32_78 : i32
    scf.if %176 {
      %c0_79 = arith.constant 0 : index
      %c0_80 = arith.constant 0 : index
      %177 = vector.load %arg17[%c0_79, %c0_80] : memref<2x128xf32, #tpu.memory_space<vmem>>, vector<2x128xf32>
      %178 = arith.addf %177, %170 : vector<2x128xf32>
      %c0_81 = arith.constant 0 : index
      %c0_82 = arith.constant 0 : index
      %179 = vector.load %arg17[%c0_81, %c0_82] : memref<2x128xf32, #tpu.memory_space<vmem>>, vector<2x128xf32>
      tpu.vector_store %arg17[%c0_81, %c0_82], %178 {strides = array<i32>} : memref<2x128xf32, #tpu.memory_space<vmem>>, vector<2x128xf32>,
    } else {
    }
    return
  }
  func.func @transform_0(%arg0: i32, %arg1: i32) -> (i32, i32) {
    %c0_i32 = arith.constant 0 : i32
    return %arg0, %arg1 : i32, i32
  }
  func.func @transform_1(%arg0: i32, %arg1: i32) -> (i32, i32) {
    %c0_i32 = arith.constant 0 : i32
    return %arg0, %arg1 : i32, i32
  }
  func.func @transform_2(%arg0: i32, %arg1: i32) -> (i32, i32) {
    %c0_i32 = arith.constant 0 : i32
    return %arg0, %arg1 : i32, i32
  }
  func.func @transform_3(%arg0: i32, %arg1: i32) -> (i32, i32) {
    %c0_i32 = arith.constant 0 : i32
    return %arg0, %arg1 : i32, i32
  }
  func.func @transform_4(%arg0: i32, %arg1: i32) -> (i32, i32) {
    %c0_i32 = arith.constant 0 : i32
    return %arg0, %arg1 : i32, i32
  }
  func.func @transform_5(%arg0: i32, %arg1: i32) -> (i32, i32) {
    %c0_i32 = arith.constant 0 : i32
    return %arg0, %arg1 : i32, i32
  }
  func.func @transform_6(%arg0: i32, %arg1: i32) -> (i32, i32) {
    %c0_i32 = arith.constant 0 : i32
    return %arg0, %arg1 : i32, i32
  }
  func.func @transform_7(%arg0: i32, %arg1: i32) -> (i32, i32) {
    %c0_i32 = arith.constant 0 : i32
    return %arg0, %arg1 : i32, i32
  }
  func.func @transform_8(%arg0: i32, %arg1: i32) -> (i32, i32) {
    %c0_i32 = arith.constant 0 : i32
    return %arg0, %arg1 : i32, i32
  }
  func.func @transform_9(%arg0: i32, %arg1: i32) -> (i32, i32) {
    %c0_i32 = arith.constant 0 : i32
    return %arg0, %arg1 : i32, i32
  }
  func.func @transform_10(%arg0: i32, %arg1: i32) -> (i32, i32) {
    %c0_i32 = arith.constant 0 : i32
    return %arg0, %arg1 : i32, i32
  }
  func.func @transform_11(%arg0: i32, %arg1: i32) -> (i32, i32) {
    %c0_i32 = arith.constant 0 : i32
    return %arg0, %arg1 : i32, i32
  }
  func.func @transform_12(%arg0: i32, %arg1: i32) -> (i32, i32) {
    %c0_i32 = arith.constant 0 : i32
    %c0_i32_0 = arith.constant 0 : i32
    return %arg0, %c0_i32 : i32, i32
  }
  func.func @transform_13(%arg0: i32, %arg1: i32) -> (i32, i32) {
    %c0_i32 = arith.constant 0 : i32
    %c0_i32_0 = arith.constant 0 : i32
    return %arg0, %c0_i32 : i32, i32
  }
  func.func @transform_14(%arg0: i32, %arg1: i32) -> (i32, i32) {
    %c0_i32 = arith.constant 0 : i32
    %c0_i32_0 = arith.constant 0 : i32
    return %arg0, %c0_i32 : i32, i32
  }
  func.func @transform_15(%arg0: i32, %arg1: i32) -> (i32, i32) {
    %c0_i32 = arith.constant 0 : i32
    %c0_i32_0 = arith.constant 0 : i32
    return %arg0, %c0_i32 : i32, i32
  }
}

</mosaic_0001>

<llo_original>
// kernel: tpu_custom_call.1
$region0: #{tpu_custom_call.1}
  #allocation0 [shape = 'u32[]', space=smem, size = 0x4, offset = 0x4, fixed_abs, tag = 'smem constant byte address 0x4 - core index']
  #allocation1 [shape = 'u32[144,128]{1,0:T(1,128)}', space=vmem, size = 0x12000, scoped, tag = 'internal scratch']
  %s0 = inlined_call_operand.hbm [shape: f32[2,1024], index: 0, kind: input, shape index: {}]
  %s1 = inlined_call_operand.hbm [shape: f32[2,1024], index: 1, kind: input, shape index: {}]
  %s2 = inlined_call_operand.hbm [shape: f32[2,1024], index: 2, kind: input, shape index: {}]
  %s3 = inlined_call_operand.hbm [shape: f32[2,1024], index: 3, kind: input, shape index: {}]
  %s4 = inlined_call_operand.hbm [shape: f32[2,1024], index: 4, kind: input, shape index: {}]
  %s5 = inlined_call_operand.hbm [shape: f32[2,1024], index: 5, kind: input, shape index: {}]
  %s6 = inlined_call_operand.hbm [shape: f32[2,1024], index: 6, kind: input, shape index: {}]
  %s7 = inlined_call_operand.hbm [shape: f32[2,1024], index: 7, kind: input, shape index: {}]
  %s8 = inlined_call_operand.hbm [shape: f32[2,1024], index: 8, kind: output, shape index: {0}]
  %s9 = inlined_call_operand.hbm [shape: f32[2,1024], index: 9, kind: output, shape index: {1}]
  %s10 = inlined_call_operand.hbm [shape: f32[2,1024], index: 10, kind: output, shape index: {2}]
  %s11 = inlined_call_operand.hbm [shape: f32[2,1024], index: 11, kind: output, shape index: {3}]
  %s12 = inlined_call_operand.hbm [shape: f32[2,128], index: 12, kind: output, shape index: {4}]
  %s13 = inlined_call_operand.hbm [shape: f32[2,128], index: 13, kind: output, shape index: {5}]
  %s14 = inlined_call_operand.hbm [shape: f32[2,128], index: 14, kind: output, shape index: {6}]
  %s15 = inlined_call_operand.hbm [shape: f32[2,128], index: 15, kind: output, shape index: {7}]
  %16 = xla_tuple %s8, %s9, %s10, %s11, %s12, %s13, %s14, %s15
  %s17 = sld [smem:[#allocation0]]
  $region162: #{tpu_custom_call.1} parent=0
    _
  %s19 = ssub.s32 1, %s17
  %s20 = scalar_select 0, %s19, %s17
  $region1: #{tpu_custom_call.1} parent=0
    #allocation2 [shape = 'u8[8192]{0}', space=vmem, size = 0x2000, scoped, tag = 'input window, operand 0, single buffered']
    #allocation3 [shape = 's32[1]{0}', space=sflag, size = 0x4, scoped, tag = 'scoped memory for tpu_custom_call.1']
    #allocation4 [shape = 's32[1]{0}', space=sflag, size = 0x4, scoped, tag = 'scoped memory for tpu_custom_call.1']
    #allocation5 [shape = 'u8[8192]{0}', space=vmem, size = 0x2000, scoped, tag = 'input window, operand 1, single buffered']
    #allocation6 [shape = 's32[1]{0}', space=sflag, size = 0x4, scoped, tag = 'scoped memory for tpu_custom_call.1']
    #allocation7 [shape = 'u8[8192]{0}', space=vmem, size = 0x2000, scoped, tag = 'input window, operand 2, single buffered']
    #allocation8 [shape = 'u8[8192]{0}', space=vmem, size = 0x2000, scoped, tag = 'input window, operand 3, single buffered']
    #allocation9 [shape = 's32[1]{0}', space=sflag, size = 0x4, scoped, tag = 'scoped memory for tpu_custom_call.1']
    #allocation10 [shape = 'u8[8192]{0}', space=vmem, size = 0x2000, scoped, tag = 'input window, operand 4, single buffered']
    #allocation11 [shape = 'u8[8192]{0}', space=vmem, size = 0x2000, scoped, tag = 'input window, operand 5, single buffered']
    #allocation12 [shape = 's32[1]{0}', space=sflag, size = 0x4, scoped, tag = 'scoped memory for tpu_custom_call.1']
    #allocation13 [shape = 'u8[8192]{0}', space=vmem, size = 0x2000, scoped, tag = 'input window, operand 6, single buffered']
    #allocation14 [shape = 'u8[8192]{0}', space=vmem, size = 0x2000, scoped, tag = 'input window, operand 7, single buffered']
    #allocation15 [shape = 's32[1]{0}', space=sflag, size = 0x4, scoped, tag = 'scoped memory for tpu_custom_call.1']
    #allocation16 [shape = 'u8[8192]{0}', space=vmem, size = 0x2000, scoped, tag = 'output window, operand 0, single buffered']
    #allocation17 [shape = 'u8[8192]{0}', space=vmem, size = 0x2000, scoped, tag = 'output window, operand 1, single buffered']
    #allocation18 [shape = 's32[1]{0}', space=sflag, size = 0x4, scoped, tag = 'scoped memory for tpu_custom_call.1']
    #allocation19 [shape = 'u8[8192]{0}', space=vmem, size = 0x2000, scoped, tag = 'output window, operand 2, single buffered']
    #allocation20 [shape = 'u8[8192]{0}', space=vmem, size = 0x2000, scoped, tag = 'output window, operand 3, single buffered']
    #allocation21 [shape = 's32[1]{0}', space=sflag, size = 0x4, scoped, tag = 'scoped memory for tpu_custom_call.1']
    #allocation22 [shape = 'u8[1024]{0}', space=vmem, size = 0x400, scoped, tag = 'output window, operand 4, single buffered']
    #allocation23 [shape = 'u8[1024]{0}', space=vmem, size = 0x400, scoped, tag = 'output window, operand 5, single buffered']
    #allocation24 [shape = 's32[1]{0}', space=sflag, size = 0x4, scoped, tag = 'scoped memory for tpu_custom_call.1']
    #allocation25 [shape = 'u8[1024]{0}', space=vmem, size = 0x400, scoped, tag = 'output window, operand 6, single buffered']
    #allocation26 [shape = 'u8[1024]{0}', space=vmem, size = 0x400, scoped, tag = 'output window, operand 7, single buffered']
    #allocation27 [shape = 's32[1]{0}', space=sflag, size = 0x4, scoped, tag = 'scoped memory for tpu_custom_call.1']
    %21 = vsyncpa [#allocation3], 0
    %22 = vsyncpa [#allocation6], 0
    %23 = vsyncpa [#allocation9], 0
    %24 = vsyncpa [#allocation12], 0
    %25 = vsyncpa [#allocation15], 0
    %26 = vsyncpa [#allocation4], 0
    %27 = vsyncpa [#allocation18], 0
    %28 = vsyncpa [#allocation21], 0
    %29 = vsyncpa [#allocation24], 0
    %30 = vsyncpa [#allocation27], 0
    // Predicated region
    $region2: #{tpu_custom_call.1} parent=1 // pred_check
      _
    $region3: #{tpu_custom_call.1} parent=1 // pred_check_branch
      %32 = sbr.rel (0) target = $region5
    $region4: #{tpu_custom_call.1} parent=1 // pred_region
      %s34 = ssub.s32 256, 256
      %35 = vsyncadd [#allocation3], %s34
      %s37 = sshll.u32 [#allocation2], 4
      %s38 = int_to_ptr.vmem [resolvable:$true] %s37
      %40 = dma.hbm_to_vmem [thread:$0]  %s0, 256, %s38, [#allocation3]
    $region5: #{tpu_custom_call.1} parent=1 // pred_fallthru
      _
    // Predicated region
    $region6: #{tpu_custom_call.1} parent=1 // pred_check
      _
    $region7: #{tpu_custom_call.1} parent=1 // pred_check_branch
      %42 = sbr.rel (0) target = $region9
    $region8: #{tpu_custom_call.1} parent=1 // pred_region
      %s44 = ssub.s32 256, 256
      %45 = vsyncadd [#allocation6], %s44
      %s47 = sshll.u32 [#allocation5], 4
      %s48 = int_to_ptr.vmem [resolvable:$true] %s47
      %50 = dma.hbm_to_vmem [thread:$0]  %s1, 256, %s48, [#allocation6]
    $region9: #{tpu_custom_call.1} parent=1 // pred_fallthru
      _
    // Predicated region
    $region10: #{tpu_custom_call.1} parent=1 // pred_check
      _
    $region11: #{tpu_custom_call.1} parent=1 // pred_check_branch
      %52 = sbr.rel (0) target = $region13
    $region12: #{tpu_custom_call.1} parent=1 // pred_region
      %s54 = ssub.s32 256, 256
      %55 = vsyncadd [#allocation6], %s54
      %s57 = sshll.u32 [#allocation7], 4
      %s58 = int_to_ptr.vmem [resolvable:$true] %s57
      %60 = dma.hbm_to_vmem [thread:$0]  %s2, 256, %s58, [#allocation6]
    $region13: #{tpu_custom_call.1} parent=1 // pred_fallthru
      _
    // Predicated region
    $region14: #{tpu_custom_call.1} parent=1 // pred_check
      _
    $region15: #{tpu_custom_call.1} parent=1 // pred_check_branch
      %62 = sbr.rel (0) target = $region17
    $region16: #{tpu_custom_call.1} parent=1 // pred_region
      %s64 = ssub.s32 256, 256
      %65 = vsyncadd [#allocation9], %s64
      %s67 = sshll.u32 [#allocation8], 4
      %s68 = int_to_ptr.vmem [resolvable:$true] %s67
      %70 = dma.hbm_to_vmem [thread:$0]  %s3, 256, %s68, [#allocation9]
    $region17: #{tpu_custom_call.1} parent=1 // pred_fallthru
      _
    // Predicated region
    $region18: #{tpu_custom_call.1} parent=1 // pred_check
      _
    $region19: #{tpu_custom_call.1} parent=1 // pred_check_branch
      %72 = sbr.rel (0) target = $region21
    $region20: #{tpu_custom_call.1} parent=1 // pred_region
      %s74 = ssub.s32 256, 256
      %75 = vsyncadd [#allocation9], %s74
      %s77 = sshll.u32 [#allocation10], 4
      %s78 = int_to_ptr.vmem [resolvable:$true] %s77
      %80 = dma.hbm_to_vmem [thread:$0]  %s4, 256, %s78, [#allocation9]
    $region21: #{tpu_custom_call.1} parent=1 // pred_fallthru
      _
    // Predicated region
    $region22: #{tpu_custom_call.1} parent=1 // pred_check
      _
    $region23: #{tpu_custom_call.1} parent=1 // pred_check_branch
      %82 = sbr.rel (0) target = $region25
    $region24: #{tpu_custom_call.1} parent=1 // pred_region
      %s84 = ssub.s32 256, 256
      %85 = vsyncadd [#allocation12], %s84
      %s87 = sshll.u32 [#allocation11], 4
      %s88 = int_to_ptr.vmem [resolvable:$true] %s87
      %90 = dma.hbm_to_vmem [thread:$0]  %s5, 256, %s88, [#allocation12]
    $region25: #{tpu_custom_call.1} parent=1 // pred_fallthru
      _
    // Predicated region
    $region26: #{tpu_custom_call.1} parent=1 // pred_check
      _
    $region27: #{tpu_custom_call.1} parent=1 // pred_check_branch
      %92 = sbr.rel (0) target = $region29
    $region28: #{tpu_custom_call.1} parent=1 // pred_region
      %s94 = ssub.s32 256, 256
      %95 = vsyncadd [#allocation12], %s94
      %s97 = sshll.u32 [#allocation13], 4
      %s98 = int_to_ptr.vmem [resolvable:$true] %s97
      %100 = dma.hbm_to_vmem [thread:$0]  %s6, 256, %s98, [#allocation12]
    $region29: #{tpu_custom_call.1} parent=1 // pred_fallthru
      _
    // Predicated region
    $region30: #{tpu_custom_call.1} parent=1 // pred_check
      _
    $region31: #{tpu_custom_call.1} parent=1 // pred_check_branch
      %102 = sbr.rel (0) target = $region33
    $region32: #{tpu_custom_call.1} parent=1 // pred_region
      %s104 = ssub.s32 256, 256
      %105 = vsyncadd [#allocation15], %s104
      %s107 = sshll.u32 [#allocation14], 4
      %s108 = int_to_ptr.vmem [resolvable:$true] %s107
      %110 = dma.hbm_to_vmem [thread:$0]  %s7, 256, %s108, [#allocation15]
    $region33: #{tpu_custom_call.1} parent=1 // pred_fallthru
      _
    // Predicated region
    $region34: #{tpu_custom_call.1} parent=1 // pred_check
      _
    $region35: #{tpu_custom_call.1} parent=1 // pred_check_branch
      %112 = sbr.rel (0) target = $region37
    $region36: #{tpu_custom_call.1} parent=1 // pred_region
      %113 = dma.done [#allocation3], 256
    $region37: #{tpu_custom_call.1} parent=1 // pred_fallthru
      _
    // Predicated region
    $region38: #{tpu_custom_call.1} parent=1 // pred_check
      _
    $region39: #{tpu_custom_call.1} parent=1 // pred_check_branch
      %115 = sbr.rel (0) target = $region41
    $region40: #{tpu_custom_call.1} parent=1 // pred_region
      %116 = dma.done [#allocation6], 256
    $region41: #{tpu_custom_call.1} parent=1 // pred_fallthru
      _
    // Predicated region
    $region42: #{tpu_custom_call.1} parent=1 // pred_check
      _
    $region43: #{tpu_custom_call.1} parent=1 // pred_check_branch
      %118 = sbr.rel (0) target = $region45
    $region44: #{tpu_custom_call.1} parent=1 // pred_region
      %119 = dma.done [#allocation6], 256
    $region45: #{tpu_custom_call.1} parent=1 // pred_fallthru
      _
    // Predicated region
    $region46: #{tpu_custom_call.1} parent=1 // pred_check
      _
    $region47: #{tpu_custom_call.1} parent=1 // pred_check_branch
      %121 = sbr.rel (0) target = $region49
    $region48: #{tpu_custom_call.1} parent=1 // pred_region
      %122 = dma.done [#allocation9], 256
    $region49: #{tpu_custom_call.1} parent=1 // pred_fallthru
      _
    // Predicated region
    $region50: #{tpu_custom_call.1} parent=1 // pred_check
      _
    $region51: #{tpu_custom_call.1} parent=1 // pred_check_branch
      %124 = sbr.rel (0) target = $region53
    $region52: #{tpu_custom_call.1} parent=1 // pred_region
      %125 = dma.done [#allocation9], 256
    $region53: #{tpu_custom_call.1} parent=1 // pred_fallthru
      _
    // Predicated region
    $region54: #{tpu_custom_call.1} parent=1 // pred_check
      _
    $region55: #{tpu_custom_call.1} parent=1 // pred_check_branch
      %127 = sbr.rel (0) target = $region57
    $region56: #{tpu_custom_call.1} parent=1 // pred_region
      %128 = dma.done [#allocation12], 256
    $region57: #{tpu_custom_call.1} parent=1 // pred_fallthru
      _
    // Predicated region
    $region58: #{tpu_custom_call.1} parent=1 // pred_check
      _
    $region59: #{tpu_custom_call.1} parent=1 // pred_check_branch
      %130 = sbr.rel (0) target = $region61
    $region60: #{tpu_custom_call.1} parent=1 // pred_region
      %131 = dma.done [#allocation12], 256
    $region61: #{tpu_custom_call.1} parent=1 // pred_fallthru
      _
    // Predicated region
    $region62: #{tpu_custom_call.1} parent=1 // pred_check
      _
    $region63: #{tpu_custom_call.1} parent=1 // pred_check_branch
      %133 = sbr.rel (0) target = $region65
    $region64: #{tpu_custom_call.1} parent=1 // pred_region
      %134 = dma.done [#allocation15], 256
    $region65: #{tpu_custom_call.1} parent=1 // pred_fallthru
      _
    %v135 = vlaneseq
    %v136 = vand.u32 %v135, 127
    %v137 = vld [vmem:[#allocation2] sm:$0xff]
    %v138 = vld [vmem:[#allocation2 + $0x8] sm:$0xff]
    %v139 = vld [vmem:[#allocation10] sm:$0xff]
    %v140 = vld [vmem:[#allocation10 + $0x8] sm:$0xff]
    %v141 = vsub.f32 %v139, %v137
    %v142 = vsub.f32 %v140, %v138
    %v143 = vmul.f32 %v141, %v141
    %v144 = vmul.f32 %v142, %v142
    %vm145 = vcmp.ge.f32.partialorder %v137, 0.1
    %vm146 = vcmp.ge.f32.partialorder %v138, 0.1
    %v147 = vsel %vm145, 1, 0
    %v148 = vsel %vm146, 1, 0
    %v149 = vcvt.s32.f32 %v147
    %v150 = vcvt.s32.f32 %v148
    %v151 = vsel %vm145, 0.0, %v143
    %v152 = vsel %vm146, 0.0, %v144
    %153 = vst [vmem:[#allocation16] sm:$0xff] %v151
    %154 = vst [vmem:[#allocation16 + $0x8] sm:$0xff] %v152
    %v155 = vmul.f32 %v143, %v149
    %v156 = vmul.f32 %v144, %v150
    %v159 = vcombine.high %v155, %v155
    %v161 = vunpack.c.l.s4 1983009808
    %v162 = vunpack.c.0.s8 %v161
    %v163 = vlaneseq
    %v164 = vshrl.u32 %v163, 7
    %v165 = vsub.s32 %v162, %v164
    %v166 = vrot.slane %v155, %v165
    %v168 = vunpack.c.l.s4 1983009808
    %v169 = vunpack.c.0.s8 %v168
    %v170 = vlaneseq
    %v171 = vshrl.u32 %v170, 7
    %v172 = vsub.s32 %v169, %v171
    %v173 = vrot.slane %v159, %v172
    %v174 = vcombine.high %v166, %v166
    %v175 = vcombine.high %v173, %v173
    %v176 = vcombine.high %v156, %v156
    %v178 = vunpack.c.l.s4 1983009808
    %v179 = vunpack.c.0.s8 %v178
    %v180 = vlaneseq
    %v181 = vshrl.u32 %v180, 7
    %v182 = vsub.s32 %v179, %v181
    %v183 = vrot.slane %v156, %v182
    %v185 = vunpack.c.l.s4 1983009808
    %v186 = vunpack.c.0.s8 %v185
    %v187 = vlaneseq
    %v188 = vshrl.u32 %v187, 7
    %v189 = vsub.s32 %v186, %v188
    %v190 = vrot.slane %v176, %v189
    %v191 = vcombine.high %v183, %v183
    %v192 = vcombine.high %v190, %v190
    %vm201 = vcmask 1041408
    %v202 = vsel %vm201, %v166, 0.0
    %v203 = vsel %vm201, %v174, 0.0
    %v204 = vadd.f32 %v202, %v203
    %v205 = vsel %vm201, %v173, 0.0
    %v206 = vadd.f32 %v204, %v205
    %v207 = vsel %vm201, %v175, 0.0
    %v208 = vadd.f32 %v206, %v207
    %v209 = vsel %vm201, %v183, 0.0
    %v210 = vadd.f32 %v208, %v209
    %v211 = vsel %vm201, %v191, 0.0
    %v212 = vadd.f32 %v210, %v211
    %v213 = vsel %vm201, %v190, 0.0
    %v214 = vadd.f32 %v212, %v213
    %v215 = vsel %vm201, %v192, 0.0
    %v216 = vadd.f32 %v214, %v215
    %217 = vadd.xlane.f32.xlu0 %v216
    %v218 = vpop.xlane.xlu0 %217
    %v221 = vcombine.high %v149, %v149
    %v223 = vunpack.c.l.s4 1983009808
    %v224 = vunpack.c.0.s8 %v223
    %v225 = vlaneseq
    %v226 = vshrl.u32 %v225, 7
    %v227 = vsub.s32 %v224, %v226
    %v228 = vrot.slane %v149, %v227
    %v230 = vunpack.c.l.s4 1983009808
    %v231 = vunpack.c.0.s8 %v230
    %v232 = vlaneseq
    %v233 = vshrl.u32 %v232, 7
    %v234 = vsub.s32 %v231, %v233
    %v235 = vrot.slane %v221, %v234
    %v236 = vcombine.high %v228, %v228
    %v237 = vcombine.high %v235, %v235
    %v238 = vcombine.high %v150, %v150
    %v240 = vunpack.c.l.s4 1983009808
    %v241 = vunpack.c.0.s8 %v240
    %v242 = vlaneseq
    %v243 = vshrl.u32 %v242, 7
    %v244 = vsub.s32 %v241, %v243
    %v245 = vrot.slane %v150, %v244
    %v247 = vunpack.c.l.s4 1983009808
    %v248 = vunpack.c.0.s8 %v247
    %v249 = vlaneseq
    %v250 = vshrl.u32 %v249, 7
    %v251 = vsub.s32 %v248, %v250
    %v252 = vrot.slane %v238, %v251
    %v253 = vcombine.high %v245, %v245
    %v254 = vcombine.high %v252, %v252
    %v263 = vsel %vm201, %v228, 0.0
    %v264 = vsel %vm201, %v236, 0.0
    %v265 = vadd.f32 %v263, %v264
    %v266 = vsel %vm201, %v235, 0.0
    %v267 = vadd.f32 %v265, %v266
    %v268 = vsel %vm201, %v237, 0.0
    %v269 = vadd.f32 %v267, %v268
    %v270 = vsel %vm201, %v245, 0.0
    %v271 = vadd.f32 %v269, %v270
    %v272 = vsel %vm201, %v253, 0.0
    %v273 = vadd.f32 %v271, %v272
    %v274 = vsel %vm201, %v252, 0.0
    %v275 = vadd.f32 %v273, %v274
    %v276 = vsel %vm201, %v254, 0.0
    %v277 = vadd.f32 %v275, %v276
    %278 = vadd.xlane.f32.xlu0 %v277
    %v279 = vpop.xlane.xlu0 %278
    %v282 = vcombine.high %v143, %v143
    %v284 = vunpack.c.l.s4 1983009808
    %v285 = vunpack.c.0.s8 %v284
    %v286 = vlaneseq
    %v287 = vshrl.u32 %v286, 7
    %v288 = vsub.s32 %v285, %v287
    %v289 = vrot.slane %v143, %v288
    %v291 = vunpack.c.l.s4 1983009808
    %v292 = vunpack.c.0.s8 %v291
    %v293 = vlaneseq
    %v294 = vshrl.u32 %v293, 7
    %v295 = vsub.s32 %v292, %v294
    %v296 = vrot.slane %v282, %v295
    %v297 = vcombine.high %v289, %v289
    %v298 = vcombine.high %v296, %v296
    %v299 = vcombine.high %v144, %v144
    %v301 = vunpack.c.l.s4 1983009808
    %v302 = vunpack.c.0.s8 %v301
    %v303 = vlaneseq
    %v304 = vshrl.u32 %v303, 7
    %v305 = vsub.s32 %v302, %v304
    %v306 = vrot.slane %v144, %v305
    %v308 = vunpack.c.l.s4 1983009808
    %v309 = vunpack.c.0.s8 %v308
    %v310 = vlaneseq
    %v311 = vshrl.u32 %v310, 7
    %v312 = vsub.s32 %v309, %v311
    %v313 = vrot.slane %v299, %v312
    %v314 = vcombine.high %v306, %v306
    %v315 = vcombine.high %v313, %v313
    %v324 = vsel %vm201, %v289, 0.0
    %v325 = vsel %vm201, %v297, 0.0
    %v326 = vadd.f32 %v324, %v325
    %v327 = vsel %vm201, %v296, 0.0
    %v328 = vadd.f32 %v326, %v327
    %v329 = vsel %vm201, %v298, 0.0
    %v330 = vadd.f32 %v328, %v329
    %v331 = vsel %vm201, %v306, 0.0
    %v332 = vadd.f32 %v330, %v331
    %v333 = vsel %vm201, %v314, 0.0
    %v334 = vadd.f32 %v332, %v333
    %v335 = vsel %vm201, %v313, 0.0
    %v336 = vadd.f32 %v334, %v335
    %v337 = vsel %vm201, %v315, 0.0
    %v338 = vadd.f32 %v336, %v337
    %339 = vadd.xlane.f32.xlu0 %v338
    %v340 = vpop.xlane.xlu0 %339
    %vm341 = vcmp.eq.s32.totalorder %v136, 0
    %v342 = vsel %vm341, %v218, 0.0
    %vm343 = vcmp.eq.s32.totalorder %v136, 1
    %v344 = vsel %vm343, %v279, 0.0
    %v345 = vadd.f32 %v342, %v344
    %vm346 = vcmp.eq.s32.totalorder %v136, 2
    %v347 = vsel %vm346, %v340, 0.0
    %v348 = vadd.f32 %v345, %v347
    %p349 = scmp.eq.s32.totalorder 0, 0
    // Predicated region
    $region66: #{tpu_custom_call.1} parent=1 // pred_check
      %p350 = pneg %p349
    $region67: #{tpu_custom_call.1} parent=1 // pred_check_branch
      %352 = sbr.rel (%p350) target = $region69
    $region68: #{tpu_custom_call.1} parent=1 // pred_region
      %353 = vst [vmem:[#allocation22] sm:$0x3] %v348
    $region69: #{tpu_custom_call.1} parent=1 // pred_fallthru
      _
    %p354 = scmp.gt.s32.totalorder 0, 0
    // Predicated region
    $region70: #{tpu_custom_call.1} parent=1 // pred_check
      %p355 = pneg %p354
    $region71: #{tpu_custom_call.1} parent=1 // pred_check_branch
      %357 = sbr.rel (%p355) target = $region73
    $region72: #{tpu_custom_call.1} parent=1 // pred_region
      %v358 = vld [vmem:[#allocation22] sm:$0x3]
      %v359 = vadd.f32 %v358, %v348
      %360 = vst [vmem:[#allocation22] sm:$0x3] %v359
    $region73: #{tpu_custom_call.1} parent=1 // pred_fallthru
      _
    %v361 = vld [vmem:[#allocation5] sm:$0xff]
    %v362 = vld [vmem:[#allocation5 + $0x8] sm:$0xff]
    %v363 = vld [vmem:[#allocation11] sm:$0xff]
    %v364 = vld [vmem:[#allocation11 + $0x8] sm:$0xff]
    %v365 = vsub.f32 %v363, %v361
    %v366 = vsub.f32 %v364, %v362
    %v367 = vmul.f32 %v365, %v365
    %v368 = vmul.f32 %v366, %v366
    %vm369 = vcmp.ge.f32.partialorder %v361, 0.1
    %vm370 = vcmp.ge.f32.partialorder %v362, 0.1
    %v371 = vsel %vm369, 1, 0
    %v372 = vsel %vm370, 1, 0
    %v373 = vcvt.s32.f32 %v371
    %v374 = vcvt.s32.f32 %v372
    %v375 = vsel %vm369, 0.0, %v367
    %v376 = vsel %vm370, 0.0, %v368
    %377 = vst [vmem:[#allocation17] sm:$0xff] %v375
    %378 = vst [vmem:[#allocation17 + $0x8] sm:$0xff] %v376
    %v379 = vmul.f32 %v367, %v373
    %v380 = vmul.f32 %v368, %v374
    %v383 = vcombine.high %v379, %v379
    %v385 = vunpack.c.l.s4 1983009808
    %v386 = vunpack.c.0.s8 %v385
    %v387 = vlaneseq
    %v388 = vshrl.u32 %v387, 7
    %v389 = vsub.s32 %v386, %v388
    %v390 = vrot.slane %v379, %v389
    %v392 = vunpack.c.l.s4 1983009808
    %v393 = vunpack.c.0.s8 %v392
    %v394 = vlaneseq
    %v395 = vshrl.u32 %v394, 7
    %v396 = vsub.s32 %v393, %v395
    %v397 = vrot.slane %v383, %v396
    %v398 = vcombine.high %v390, %v390
    %v399 = vcombine.high %v397, %v397
    %v400 = vcombine.high %v380, %v380
    %v402 = vunpack.c.l.s4 1983009808
    %v403 = vunpack.c.0.s8 %v402
    %v404 = vlaneseq
    %v405 = vshrl.u32 %v404, 7
    %v406 = vsub.s32 %v403, %v405
    %v407 = vrot.slane %v380, %v406
    %v409 = vunpack.c.l.s4 1983009808
    %v410 = vunpack.c.0.s8 %v409
    %v411 = vlaneseq
    %v412 = vshrl.u32 %v411, 7
    %v413 = vsub.s32 %v410, %v412
    %v414 = vrot.slane %v400, %v413
    %v415 = vcombine.high %v407, %v407
    %v416 = vcombine.high %v414, %v414
    %v425 = vsel %vm201, %v390, 0.0
    %v426 = vsel %vm201, %v398, 0.0
    %v427 = vadd.f32 %v425, %v426
    %v428 = vsel %vm201, %v397, 0.0
    %v429 = vadd.f32 %v427, %v428
    %v430 = vsel %vm201, %v399, 0.0
    %v431 = vadd.f32 %v429, %v430
    %v432 = vsel %vm201, %v407, 0.0
    %v433 = vadd.f32 %v431, %v432
    %v434 = vsel %vm201, %v415, 0.0
    %v435 = vadd.f32 %v433, %v434
    %v436 = vsel %vm201, %v414, 0.0
    %v437 = vadd.f32 %v435, %v436
    %v438 = vsel %vm201, %v416, 0.0
    %v439 = vadd.f32 %v437, %v438
    %440 = vadd.xlane.f32.xlu0 %v439
    %v441 = vpop.xlane.xlu0 %440
    %v444 = vcombine.high %v373, %v373
    %v446 = vunpack.c.l.s4 1983009808
    %v447 = vunpack.c.0.s8 %v446
    %v448 = vlaneseq
    %v449 = vshrl.u32 %v448, 7
    %v450 = vsub.s32 %v447, %v449
    %v451 = vrot.slane %v373, %v450
    %v453 = vunpack.c.l.s4 1983009808
    %v454 = vunpack.c.0.s8 %v453
    %v455 = vlaneseq
    %v456 = vshrl.u32 %v455, 7
    %v457 = vsub.s32 %v454, %v456
    %v458 = vrot.slane %v444, %v457
    %v459 = vcombine.high %v451, %v451
    %v460 = vcombine.high %v458, %v458
    %v461 = vcombine.high %v374, %v374
    %v463 = vunpack.c.l.s4 1983009808
    %v464 = vunpack.c.0.s8 %v463
    %v465 = vlaneseq
    %v466 = vshrl.u32 %v465, 7
    %v467 = vsub.s32 %v464, %v466
    %v468 = vrot.slane %v374, %v467
    %v470 = vunpack.c.l.s4 1983009808
    %v471 = vunpack.c.0.s8 %v470
    %v472 = vlaneseq
    %v473 = vshrl.u32 %v472, 7
    %v474 = vsub.s32 %v471, %v473
    %v475 = vrot.slane %v461, %v474
    %v476 = vcombine.high %v468, %v468
    %v477 = vcombine.high %v475, %v475
    %v486 = vsel %vm201, %v451, 0.0
    %v487 = vsel %vm201, %v459, 0.0
    %v488 = vadd.f32 %v486, %v487
    %v489 = vsel %vm201, %v458, 0.0
    %v490 = vadd.f32 %v488, %v489
    %v491 = vsel %vm201, %v460, 0.0
    %v492 = vadd.f32 %v490, %v491
    %v493 = vsel %vm201, %v468, 0.0
    %v494 = vadd.f32 %v492, %v493
    %v495 = vsel %vm201, %v476, 0.0
    %v496 = vadd.f32 %v494, %v495
    %v497 = vsel %vm201, %v475, 0.0
    %v498 = vadd.f32 %v496, %v497
    %v499 = vsel %vm201, %v477, 0.0
    %v500 = vadd.f32 %v498, %v499
    %501 = vadd.xlane.f32.xlu0 %v500
    %v502 = vpop.xlane.xlu0 %501
    %v505 = vcombine.high %v367, %v367
    %v507 = vunpack.c.l.s4 1983009808
    %v508 = vunpack.c.0.s8 %v507
    %v509 = vlaneseq
    %v510 = vshrl.u32 %v509, 7
    %v511 = vsub.s32 %v508, %v510
    %v512 = vrot.slane %v367, %v511
    %v514 = vunpack.c.l.s4 1983009808
    %v515 = vunpack.c.0.s8 %v514
    %v516 = vlaneseq
    %v517 = vshrl.u32 %v516, 7
    %v518 = vsub.s32 %v515, %v517
    %v519 = vrot.slane %v505, %v518
    %v520 = vcombine.high %v512, %v512
    %v521 = vcombine.high %v519, %v519
    %v522 = vcombine.high %v368, %v368
    %v524 = vunpack.c.l.s4 1983009808
    %v525 = vunpack.c.0.s8 %v524
    %v526 = vlaneseq
    %v527 = vshrl.u32 %v526, 7
    %v528 = vsub.s32 %v525, %v527
    %v529 = vrot.slane %v368, %v528
    %v531 = vunpack.c.l.s4 1983009808
    %v532 = vunpack.c.0.s8 %v531
    %v533 = vlaneseq
    %v534 = vshrl.u32 %v533, 7
    %v535 = vsub.s32 %v532, %v534
    %v536 = vrot.slane %v522, %v535
    %v537 = vcombine.high %v529, %v529
    %v538 = vcombine.high %v536, %v536
    %v547 = vsel %vm201, %v512, 0.0
    %v548 = vsel %vm201, %v520, 0.0
    %v549 = vadd.f32 %v547, %v548
    %v550 = vsel %vm201, %v519, 0.0
    %v551 = vadd.f32 %v549, %v550
    %v552 = vsel %vm201, %v521, 0.0
    %v553 = vadd.f32 %v551, %v552
    %v554 = vsel %vm201, %v529, 0.0
    %v555 = vadd.f32 %v553, %v554
    %v556 = vsel %vm201, %v537, 0.0
    %v557 = vadd.f32 %v555, %v556
    %v558 = vsel %vm201, %v536, 0.0
    %v559 = vadd.f32 %v557, %v558
    %v560 = vsel %vm201, %v538, 0.0
    %v561 = vadd.f32 %v559, %v560
    %562 = vadd.xlane.f32.xlu0 %v561
    %v563 = vpop.xlane.xlu0 %562
    %v564 = vsel %vm341, %v441, 0.0
    %v565 = vsel %vm343, %v502, 0.0
    %v566 = vadd.f32 %v564, %v565
    %v567 = vsel %vm346, %v563, 0.0
    %v568 = vadd.f32 %v566, %v567
    // Predicated region
    $region74: #{tpu_custom_call.1} parent=1 // pred_check
      %p569 = pneg %p349
    $region75: #{tpu_custom_call.1} parent=1 // pred_check_branch
      %571 = sbr.rel (%p569) target = $region77
    $region76: #{tpu_custom_call.1} parent=1 // pred_region
      %572 = vst [vmem:[#allocation23] sm:$0x3] %v568
    $region77: #{tpu_custom_call.1} parent=1 // pred_fallthru
      _
    // Predicated region
    $region78: #{tpu_custom_call.1} parent=1 // pred_check
      %p573 = pneg %p354
    $region79: #{tpu_custom_call.1} parent=1 // pred_check_branch
      %575 = sbr.rel (%p573) target = $region81
    $region80: #{tpu_custom_call.1} parent=1 // pred_region
      %v576 = vld [vmem:[#allocation23] sm:$0x3]
      %v577 = vadd.f32 %v576, %v568
      %578 = vst [vmem:[#allocation23] sm:$0x3] %v577
    $region81: #{tpu_custom_call.1} parent=1 // pred_fallthru
      _
    %v579 = vld [vmem:[#allocation7] sm:$0xff]
    %v580 = vld [vmem:[#allocation7 + $0x8] sm:$0xff]
    %v581 = vld [vmem:[#allocation13] sm:$0xff]
    %v582 = vld [vmem:[#allocation13 + $0x8] sm:$0xff]
    %v583 = vsub.f32 %v581, %v579
    %v584 = vsub.f32 %v582, %v580
    %v585 = vmul.f32 %v583, %v583
    %v586 = vmul.f32 %v584, %v584
    %vm587 = vcmp.ge.f32.partialorder %v579, 0.1
    %vm588 = vcmp.ge.f32.partialorder %v580, 0.1
    %v589 = vsel %vm587, 1, 0
    %v590 = vsel %vm588, 1, 0
    %v591 = vcvt.s32.f32 %v589
    %v592 = vcvt.s32.f32 %v590
    %v593 = vsel %vm587, 0.0, %v585
    %v594 = vsel %vm588, 0.0, %v586
    %595 = vst [vmem:[#allocation19] sm:$0xff] %v593
    %596 = vst [vmem:[#allocation19 + $0x8] sm:$0xff] %v594
    %v597 = vmul.f32 %v585, %v591
    %v598 = vmul.f32 %v586, %v592
    %v601 = vcombine.high %v597, %v597
    %v603 = vunpack.c.l.s4 1983009808
    %v604 = vunpack.c.0.s8 %v603
    %v605 = vlaneseq
    %v606 = vshrl.u32 %v605, 7
    %v607 = vsub.s32 %v604, %v606
    %v608 = vrot.slane %v597, %v607
    %v610 = vunpack.c.l.s4 1983009808
    %v611 = vunpack.c.0.s8 %v610
    %v612 = vlaneseq
    %v613 = vshrl.u32 %v612, 7
    %v614 = vsub.s32 %v611, %v613
    %v615 = vrot.slane %v601, %v614
    %v616 = vcombine.high %v608, %v608
    %v617 = vcombine.high %v615, %v615
    %v618 = vcombine.high %v598, %v598
    %v620 = vunpack.c.l.s4 1983009808
    %v621 = vunpack.c.0.s8 %v620
    %v622 = vlaneseq
    %v623 = vshrl.u32 %v622, 7
    %v624 = vsub.s32 %v621, %v623
    %v625 = vrot.slane %v598, %v624
    %v627 = vunpack.c.l.s4 1983009808
    %v628 = vunpack.c.0.s8 %v627
    %v629 = vlaneseq
    %v630 = vshrl.u32 %v629, 7
    %v631 = vsub.s32 %v628, %v630
    %v632 = vrot.slane %v618, %v631
    %v633 = vcombine.high %v625, %v625
    %v634 = vcombine.high %v632, %v632
    %v643 = vsel %vm201, %v608, 0.0
    %v644 = vsel %vm201, %v616, 0.0
    %v645 = vadd.f32 %v643, %v644
    %v646 = vsel %vm201, %v615, 0.0
    %v647 = vadd.f32 %v645, %v646
    %v648 = vsel %vm201, %v617, 0.0
    %v649 = vadd.f32 %v647, %v648
    %v650 = vsel %vm201, %v625, 0.0
    %v651 = vadd.f32 %v649, %v650
    %v652 = vsel %vm201, %v633, 0.0
    %v653 = vadd.f32 %v651, %v652
    %v654 = vsel %vm201, %v632, 0.0
    %v655 = vadd.f32 %v653, %v654
    %v656 = vsel %vm201, %v634, 0.0
    %v657 = vadd.f32 %v655, %v656
    %658 = vadd.xlane.f32.xlu0 %v657
    %v659 = vpop.xlane.xlu0 %658
    %v662 = vcombine.high %v591, %v591
    %v664 = vunpack.c.l.s4 1983009808
    %v665 = vunpack.c.0.s8 %v664
    %v666 = vlaneseq
    %v667 = vshrl.u32 %v666, 7
    %v668 = vsub.s32 %v665, %v667
    %v669 = vrot.slane %v591, %v668
    %v671 = vunpack.c.l.s4 1983009808
    %v672 = vunpack.c.0.s8 %v671
    %v673 = vlaneseq
    %v674 = vshrl.u32 %v673, 7
    %v675 = vsub.s32 %v672, %v674
    %v676 = vrot.slane %v662, %v675
    %v677 = vcombine.high %v669, %v669
    %v678 = vcombine.high %v676, %v676
    %v679 = vcombine.high %v592, %v592
    %v681 = vunpack.c.l.s4 1983009808
    %v682 = vunpack.c.0.s8 %v681
    %v683 = vlaneseq
    %v684 = vshrl.u32 %v683, 7
    %v685 = vsub.s32 %v682, %v684
    %v686 = vrot.slane %v592, %v685
    %v688 = vunpack.c.l.s4 1983009808
    %v689 = vunpack.c.0.s8 %v688
    %v690 = vlaneseq
    %v691 = vshrl.u32 %v690, 7
    %v692 = vsub.s32 %v689, %v691
    %v693 = vrot.slane %v679, %v692
    %v694 = vcombine.high %v686, %v686
    %v695 = vcombine.high %v693, %v693
    %v704 = vsel %vm201, %v669, 0.0
    %v705 = vsel %vm201, %v677, 0.0
    %v706 = vadd.f32 %v704, %v705
    %v707 = vsel %vm201, %v676, 0.0
    %v708 = vadd.f32 %v706, %v707
    %v709 = vsel %vm201, %v678, 0.0
    %v710 = vadd.f32 %v708, %v709
    %v711 = vsel %vm201, %v686, 0.0
    %v712 = vadd.f32 %v710, %v711
    %v713 = vsel %vm201, %v694, 0.0
    %v714 = vadd.f32 %v712, %v713
    %v715 = vsel %vm201, %v693, 0.0
    %v716 = vadd.f32 %v714, %v715
    %v717 = vsel %vm201, %v695, 0.0
    %v718 = vadd.f32 %v716, %v717
    %719 = vadd.xlane.f32.xlu0 %v718
    %v720 = vpop.xlane.xlu0 %719
    %v723 = vcombine.high %v585, %v585
    %v725 = vunpack.c.l.s4 1983009808
    %v726 = vunpack.c.0.s8 %v725
    %v727 = vlaneseq
    %v728 = vshrl.u32 %v727, 7
    %v729 = vsub.s32 %v726, %v728
    %v730 = vrot.slane %v585, %v729
    %v732 = vunpack.c.l.s4 1983009808
    %v733 = vunpack.c.0.s8 %v732
    %v734 = vlaneseq
    %v735 = vshrl.u32 %v734, 7
    %v736 = vsub.s32 %v733, %v735
    %v737 = vrot.slane %v723, %v736
    %v738 = vcombine.high %v730, %v730
    %v739 = vcombine.high %v737, %v737
    %v740 = vcombine.high %v586, %v586
    %v742 = vunpack.c.l.s4 1983009808
    %v743 = vunpack.c.0.s8 %v742
    %v744 = vlaneseq
    %v745 = vshrl.u32 %v744, 7
    %v746 = vsub.s32 %v743, %v745
    %v747 = vrot.slane %v586, %v746
    %v749 = vunpack.c.l.s4 1983009808
    %v750 = vunpack.c.0.s8 %v749
    %v751 = vlaneseq
    %v752 = vshrl.u32 %v751, 7
    %v753 = vsub.s32 %v750, %v752
    %v754 = vrot.slane %v740, %v753
    %v755 = vcombine.high %v747, %v747
    %v756 = vcombine.high %v754, %v754
    %v765 = vsel %vm201, %v730, 0.0
    %v766 = vsel %vm201, %v738, 0.0
    %v767 = vadd.f32 %v765, %v766
    %v768 = vsel %vm201, %v737, 0.0
    %v769 = vadd.f32 %v767, %v768
    %v770 = vsel %vm201, %v739, 0.0
    %v771 = vadd.f32 %v769, %v770
    %v772 = vsel %vm201, %v747, 0.0
    %v773 = vadd.f32 %v771, %v772
    %v774 = vsel %vm201, %v755, 0.0
    %v775 = vadd.f32 %v773, %v774
    %v776 = vsel %vm201, %v754, 0.0
    %v777 = vadd.f32 %v775, %v776
    %v778 = vsel %vm201, %v756, 0.0
    %v779 = vadd.f32 %v777, %v778
    %780 = vadd.xlane.f32.xlu0 %v779
    %v781 = vpop.xlane.xlu0 %780
    %v782 = vsel %vm341, %v659, 0.0
    %v783 = vsel %vm343, %v720, 0.0
    %v784 = vadd.f32 %v782, %v783
    %v785 = vsel %vm346, %v781, 0.0
    %v786 = vadd.f32 %v784, %v785
    // Predicated region
    $region82: #{tpu_custom_call.1} parent=1 // pred_check
      %p787 = pneg %p349
    $region83: #{tpu_custom_call.1} parent=1 // pred_check_branch
      %789 = sbr.rel (%p787) target = $region85
    $region84: #{tpu_custom_call.1} parent=1 // pred_region
      %790 = vst [vmem:[#allocation25] sm:$0x3] %v786
    $region85: #{tpu_custom_call.1} parent=1 // pred_fallthru
      _
    // Predicated region
    $region86: #{tpu_custom_call.1} parent=1 // pred_check
      %p791 = pneg %p354
    $region87: #{tpu_custom_call.1} parent=1 // pred_check_branch
      %793 = sbr.rel (%p791) target = $region89
    $region88: #{tpu_custom_call.1} parent=1 // pred_region
      %v794 = vld [vmem:[#allocation25] sm:$0x3]
      %v795 = vadd.f32 %v794, %v786
      %796 = vst [vmem:[#allocation25] sm:$0x3] %v795
    $region89: #{tpu_custom_call.1} parent=1 // pred_fallthru
      _
    %v797 = vld [vmem:[#allocation8] sm:$0xff]
    %v798 = vld [vmem:[#allocation8 + $0x8] sm:$0xff]
    %v799 = vld [vmem:[#allocation14] sm:$0xff]
    %v800 = vld [vmem:[#allocation14 + $0x8] sm:$0xff]
    %v801 = vsub.f32 %v799, %v797
    %v802 = vsub.f32 %v800, %v798
    %v803 = vmul.f32 %v801, %v801
    %v804 = vmul.f32 %v802, %v802
    %vm805 = vcmp.ge.f32.partialorder %v797, 0.1
    %vm806 = vcmp.ge.f32.partialorder %v798, 0.1
    %v807 = vsel %vm805, 1, 0
    %v808 = vsel %vm806, 1, 0
    %v809 = vcvt.s32.f32 %v807
    %v810 = vcvt.s32.f32 %v808
    %v811 = vsel %vm805, 0.0, %v803
    %v812 = vsel %vm806, 0.0, %v804
    %813 = vst [vmem:[#allocation20] sm:$0xff] %v811
    %814 = vst [vmem:[#allocation20 + $0x8] sm:$0xff] %v812
    %v815 = vmul.f32 %v803, %v809
    %v816 = vmul.f32 %v804, %v810
    %v819 = vcombine.high %v815, %v815
    %v821 = vunpack.c.l.s4 1983009808
    %v822 = vunpack.c.0.s8 %v821
    %v823 = vlaneseq
    %v824 = vshrl.u32 %v823, 7
    %v825 = vsub.s32 %v822, %v824
    %v826 = vrot.slane %v815, %v825
    %v828 = vunpack.c.l.s4 1983009808
    %v829 = vunpack.c.0.s8 %v828
    %v830 = vlaneseq
    %v831 = vshrl.u32 %v830, 7
    %v832 = vsub.s32 %v829, %v831
    %v833 = vrot.slane %v819, %v832
    %v834 = vcombine.high %v826, %v826
    %v835 = vcombine.high %v833, %v833
    %v836 = vcombine.high %v816, %v816
    %v838 = vunpack.c.l.s4 1983009808
    %v839 = vunpack.c.0.s8 %v838
    %v840 = vlaneseq
    %v841 = vshrl.u32 %v840, 7
    %v842 = vsub.s32 %v839, %v841
    %v843 = vrot.slane %v816, %v842
    %v845 = vunpack.c.l.s4 1983009808
    %v846 = vunpack.c.0.s8 %v845
    %v847 = vlaneseq
    %v848 = vshrl.u32 %v847, 7
    %v849 = vsub.s32 %v846, %v848
    %v850 = vrot.slane %v836, %v849
    %v851 = vcombine.high %v843, %v843
    %v852 = vcombine.high %v850, %v850
    %v861 = vsel %vm201, %v826, 0.0
    %v862 = vsel %vm201, %v834, 0.0
    %v863 = vadd.f32 %v861, %v862
    %v864 = vsel %vm201, %v833, 0.0
    %v865 = vadd.f32 %v863, %v864
    %v866 = vsel %vm201, %v835, 0.0
    %v867 = vadd.f32 %v865, %v866
    %v868 = vsel %vm201, %v843, 0.0
    %v869 = vadd.f32 %v867, %v868
    %v870 = vsel %vm201, %v851, 0.0
    %v871 = vadd.f32 %v869, %v870
    %v872 = vsel %vm201, %v850, 0.0
    %v873 = vadd.f32 %v871, %v872
    %v874 = vsel %vm201, %v852, 0.0
    %v875 = vadd.f32 %v873, %v874
    %876 = vadd.xlane.f32.xlu0 %v875
    %v877 = vpop.xlane.xlu0 %876
    %v880 = vcombine.high %v809, %v809
    %v882 = vunpack.c.l.s4 1983009808
    %v883 = vunpack.c.0.s8 %v882
    %v884 = vlaneseq
    %v885 = vshrl.u32 %v884, 7
    %v886 = vsub.s32 %v883, %v885
    %v887 = vrot.slane %v809, %v886
    %v889 = vunpack.c.l.s4 1983009808
    %v890 = vunpack.c.0.s8 %v889
    %v891 = vlaneseq
    %v892 = vshrl.u32 %v891, 7
    %v893 = vsub.s32 %v890, %v892
    %v894 = vrot.slane %v880, %v893
    %v895 = vcombine.high %v887, %v887
    %v896 = vcombine.high %v894, %v894
    %v897 = vcombine.high %v810, %v810
    %v899 = vunpack.c.l.s4 1983009808
    %v900 = vunpack.c.0.s8 %v899
    %v901 = vlaneseq
    %v902 = vshrl.u32 %v901, 7
    %v903 = vsub.s32 %v900, %v902
    %v904 = vrot.slane %v810, %v903
    %v906 = vunpack.c.l.s4 1983009808
    %v907 = vunpack.c.0.s8 %v906
    %v908 = vlaneseq
    %v909 = vshrl.u32 %v908, 7
    %v910 = vsub.s32 %v907, %v909
    %v911 = vrot.slane %v897, %v910
    %v912 = vcombine.high %v904, %v904
    %v913 = vcombine.high %v911, %v911
    %v922 = vsel %vm201, %v887, 0.0
    %v923 = vsel %vm201, %v895, 0.0
    %v924 = vadd.f32 %v922, %v923
    %v925 = vsel %vm201, %v894, 0.0
    %v926 = vadd.f32 %v924, %v925
    %v927 = vsel %vm201, %v896, 0.0
    %v928 = vadd.f32 %v926, %v927
    %v929 = vsel %vm201, %v904, 0.0
    %v930 = vadd.f32 %v928, %v929
    %v931 = vsel %vm201, %v912, 0.0
    %v932 = vadd.f32 %v930, %v931
    %v933 = vsel %vm201, %v911, 0.0
    %v934 = vadd.f32 %v932, %v933
    %v935 = vsel %vm201, %v913, 0.0
    %v936 = vadd.f32 %v934, %v935
    %937 = vadd.xlane.f32.xlu0 %v936
    %v938 = vpop.xlane.xlu0 %937
    %v941 = vcombine.high %v803, %v803
    %v943 = vunpack.c.l.s4 1983009808
    %v944 = vunpack.c.0.s8 %v943
    %v945 = vlaneseq
    %v946 = vshrl.u32 %v945, 7
    %v947 = vsub.s32 %v944, %v946
    %v948 = vrot.slane %v803, %v947
    %v950 = vunpack.c.l.s4 1983009808
    %v951 = vunpack.c.0.s8 %v950
    %v952 = vlaneseq
    %v953 = vshrl.u32 %v952, 7
    %v954 = vsub.s32 %v951, %v953
    %v955 = vrot.slane %v941, %v954
    %v956 = vcombine.high %v948, %v948
    %v957 = vcombine.high %v955, %v955
    %v958 = vcombine.high %v804, %v804
    %v960 = vunpack.c.l.s4 1983009808
    %v961 = vunpack.c.0.s8 %v960
    %v962 = vlaneseq
    %v963 = vshrl.u32 %v962, 7
    %v964 = vsub.s32 %v961, %v963
    %v965 = vrot.slane %v804, %v964
    %v967 = vunpack.c.l.s4 1983009808
    %v968 = vunpack.c.0.s8 %v967
    %v969 = vlaneseq
    %v970 = vshrl.u32 %v969, 7
    %v971 = vsub.s32 %v968, %v970
    %v972 = vrot.slane %v958, %v971
    %v973 = vcombine.high %v965, %v965
    %v974 = vcombine.high %v972, %v972
    %v983 = vsel %vm201, %v948, 0.0
    %v984 = vsel %vm201, %v956, 0.0
    %v985 = vadd.f32 %v983, %v984
    %v986 = vsel %vm201, %v955, 0.0
    %v987 = vadd.f32 %v985, %v986
    %v988 = vsel %vm201, %v957, 0.0
    %v989 = vadd.f32 %v987, %v988
    %v990 = vsel %vm201, %v965, 0.0
    %v991 = vadd.f32 %v989, %v990
    %v992 = vsel %vm201, %v973, 0.0
    %v993 = vadd.f32 %v991, %v992
    %v994 = vsel %vm201, %v972, 0.0
    %v995 = vadd.f32 %v993, %v994
    %v996 = vsel %vm201, %v974, 0.0
    %v997 = vadd.f32 %v995, %v996
    %998 = vadd.xlane.f32.xlu0 %v997
    %v999 = vpop.xlane.xlu0 %998
    %v1000 = vsel %vm341, %v877, 0.0
    %v1001 = vsel %vm343, %v938, 0.0
    %v1002 = vadd.f32 %v1000, %v1001
    %v1003 = vsel %vm346, %v999, 0.0
    %v1004 = vadd.f32 %v1002, %v1003
    // Predicated region
    $region90: #{tpu_custom_call.1} parent=1 // pred_check
      %p1005 = pneg %p349
    $region91: #{tpu_custom_call.1} parent=1 // pred_check_branch
      %1007 = sbr.rel (%p1005) target = $region93
    $region92: #{tpu_custom_call.1} parent=1 // pred_region
      %1008 = vst [vmem:[#allocation26] sm:$0x3] %v1004
    $region93: #{tpu_custom_call.1} parent=1 // pred_fallthru
      _
    // Predicated region
    $region94: #{tpu_custom_call.1} parent=1 // pred_check
      %p1009 = pneg %p354
    $region95: #{tpu_custom_call.1} parent=1 // pred_check_branch
      %1011 = sbr.rel (%p1009) target = $region97
    $region96: #{tpu_custom_call.1} parent=1 // pred_region
      %v1012 = vld [vmem:[#allocation26] sm:$0x3]
      %v1013 = vadd.f32 %v1012, %v1004
      %1014 = vst [vmem:[#allocation26] sm:$0x3] %v1013
    $region97: #{tpu_custom_call.1} parent=1 // pred_fallthru
      _
    // Predicated region
    $region98: #{tpu_custom_call.1} parent=1 // pred_check
      _
    $region99: #{tpu_custom_call.1} parent=1 // pred_check_branch
      %1016 = sbr.rel (0) target = $region101
    $region100: #{tpu_custom_call.1} parent=1 // pred_region
      %s1018 = ssub.s32 256, 256
      %1019 = vsyncadd [#allocation4], %s1018
      %s1021 = sshll.u32 [#allocation16], 4
      %s1022 = int_to_ptr.vmem [resolvable:$true] %s1021
      %1024 = dma.vmem_to_hbm [thread:$0]  %s1022, 256, %s8, [#allocation4]
    $region101: #{tpu_custom_call.1} parent=1 // pred_fallthru
      _
    // Predicated region
    $region102: #{tpu_custom_call.1} parent=1 // pred_check
      _
    $region103: #{tpu_custom_call.1} parent=1 // pred_check_branch
      %1026 = sbr.rel (0) target = $region105
    $region104: #{tpu_custom_call.1} parent=1 // pred_region
      %s1028 = ssub.s32 256, 256
      %1029 = vsyncadd [#allocation18], %s1028
      %s1031 = sshll.u32 [#allocation17], 4
      %s1032 = int_to_ptr.vmem [resolvable:$true] %s1031
      %1034 = dma.vmem_to_hbm [thread:$0]  %s1032, 256, %s9, [#allocation18]
    $region105: #{tpu_custom_call.1} parent=1 // pred_fallthru
      _
    // Predicated region
    $region106: #{tpu_custom_call.1} parent=1 // pred_check
      _
    $region107: #{tpu_custom_call.1} parent=1 // pred_check_branch
      %1036 = sbr.rel (0) target = $region109
    $region108: #{tpu_custom_call.1} parent=1 // pred_region
      %s1038 = ssub.s32 256, 256
      %1039 = vsyncadd [#allocation18], %s1038
      %s1041 = sshll.u32 [#allocation19], 4
      %s1042 = int_to_ptr.vmem [resolvable:$true] %s1041
      %1044 = dma.vmem_to_hbm [thread:$0]  %s1042, 256, %s10, [#allocation18]
    $region109: #{tpu_custom_call.1} parent=1 // pred_fallthru
      _
    // Predicated region
    $region110: #{tpu_custom_call.1} parent=1 // pred_check
      _
    $region111: #{tpu_custom_call.1} parent=1 // pred_check_branch
      %1046 = sbr.rel (0) target = $region113
    $region112: #{tpu_custom_call.1} parent=1 // pred_region
      %s1048 = ssub.s32 256, 256
      %1049 = vsyncadd [#allocation21], %s1048
      %s1051 = sshll.u32 [#allocation20], 4
      %s1052 = int_to_ptr.vmem [resolvable:$true] %s1051
      %1054 = dma.vmem_to_hbm [thread:$0]  %s1052, 256, %s11, [#allocation21]
    $region113: #{tpu_custom_call.1} parent=1 // pred_fallthru
      _
    // Predicated region
    $region114: #{tpu_custom_call.1} parent=1 // pred_check
      _
    $region115: #{tpu_custom_call.1} parent=1 // pred_check_branch
      %1056 = sbr.rel (0) target = $region117
    $region116: #{tpu_custom_call.1} parent=1 // pred_region
      %s1058 = ssub.s32 32, 32
      %1059 = vsyncadd [#allocation21], %s1058
      %s1061 = sshll.u32 [#allocation22], 4
      %s1062 = int_to_ptr.vmem [resolvable:$true] %s1061
      %1064 = dma.vmem_to_hbm [thread:$0]  %s1062, 32, %s12, [#allocation21]
    $region117: #{tpu_custom_call.1} parent=1 // pred_fallthru
      _
    // Predicated region
    $region118: #{tpu_custom_call.1} parent=1 // pred_check
      _
    $region119: #{tpu_custom_call.1} parent=1 // pred_check_branch
      %1066 = sbr.rel (0) target = $region121
    $region120: #{tpu_custom_call.1} parent=1 // pred_region
      %s1068 = ssub.s32 32, 32
      %1069 = vsyncadd [#allocation24], %s1068
      %s1071 = sshll.u32 [#allocation23], 4
      %s1072 = int_to_ptr.vmem [resolvable:$true] %s1071
      %1074 = dma.vmem_to_hbm [thread:$0]  %s1072, 32, %s13, [#allocation24]
    $region121: #{tpu_custom_call.1} parent=1 // pred_fallthru
      _
    // Predicated region
    $region122: #{tpu_custom_call.1} parent=1 // pred_check
      _
    $region123: #{tpu_custom_call.1} parent=1 // pred_check_branch
      %1076 = sbr.rel (0) target = $region125
    $region124: #{tpu_custom_call.1} parent=1 // pred_region
      %s1078 = ssub.s32 32, 32
      %1079 = vsyncadd [#allocation24], %s1078
      %s1081 = sshll.u32 [#allocation25], 4
      %s1082 = int_to_ptr.vmem [resolvable:$true] %s1081
      %1084 = dma.vmem_to_hbm [thread:$0]  %s1082, 32, %s14, [#allocation24]
    $region125: #{tpu_custom_call.1} parent=1 // pred_fallthru
      _
    // Predicated region
    $region126: #{tpu_custom_call.1} parent=1 // pred_check
      _
    $region127: #{tpu_custom_call.1} parent=1 // pred_check_branch
      %1086 = sbr.rel (0) target = $region129
    $region128: #{tpu_custom_call.1} parent=1 // pred_region
      %s1088 = ssub.s32 32, 32
      %1089 = vsyncadd [#allocation27], %s1088
      %s1091 = sshll.u32 [#allocation26], 4
      %s1092 = int_to_ptr.vmem [resolvable:$true] %s1091
      %1094 = dma.vmem_to_hbm [thread:$0]  %s1092, 32, %s15, [#allocation27]
    $region129: #{tpu_custom_call.1} parent=1 // pred_fallthru
      _
    // Predicated region
    $region130: #{tpu_custom_call.1} parent=1 // pred_check
      _
    $region131: #{tpu_custom_call.1} parent=1 // pred_check_branch
      %1096 = sbr.rel (0) target = $region133
    $region132: #{tpu_custom_call.1} parent=1 // pred_region
      %1097 = dma.done [#allocation4], 256
    $region133: #{tpu_custom_call.1} parent=1 // pred_fallthru
      _
    // Predicated region
    $region134: #{tpu_custom_call.1} parent=1 // pred_check
      _
    $region135: #{tpu_custom_call.1} parent=1 // pred_check_branch
      %1099 = sbr.rel (0) target = $region137
    $region136: #{tpu_custom_call.1} parent=1 // pred_region
      %1100 = dma.done [#allocation18], 256
    $region137: #{tpu_custom_call.1} parent=1 // pred_fallthru
      _
    // Predicated region
    $region138: #{tpu_custom_call.1} parent=1 // pred_check
      _
    $region139: #{tpu_custom_call.1} parent=1 // pred_check_branch
      %1102 = sbr.rel (0) target = $region141
    $region140: #{tpu_custom_call.1} parent=1 // pred_region
      %1103 = dma.done [#allocation18], 256
    $region141: #{tpu_custom_call.1} parent=1 // pred_fallthru
      _
    // Predicated region
    $region142: #{tpu_custom_call.1} parent=1 // pred_check
      _
    $region143: #{tpu_custom_call.1} parent=1 // pred_check_branch
      %1105 = sbr.rel (0) target = $region145
    $region144: #{tpu_custom_call.1} parent=1 // pred_region
      %1106 = dma.done [#allocation21], 256
    $region145: #{tpu_custom_call.1} parent=1 // pred_fallthru
      _
    // Predicated region
    $region146: #{tpu_custom_call.1} parent=1 // pred_check
      _
    $region147: #{tpu_custom_call.1} parent=1 // pred_check_branch
      %1108 = sbr.rel (0) target = $region149
    $region148: #{tpu_custom_call.1} parent=1 // pred_region
      %1109 = dma.done [#allocation21], 32
    $region149: #{tpu_custom_call.1} parent=1 // pred_fallthru
      _
    // Predicated region
    $region150: #{tpu_custom_call.1} parent=1 // pred_check
      _
    $region151: #{tpu_custom_call.1} parent=1 // pred_check_branch
      %1111 = sbr.rel (0) target = $region153
    $region152: #{tpu_custom_call.1} parent=1 // pred_region
      %1112 = dma.done [#allocation24], 32
    $region153: #{tpu_custom_call.1} parent=1 // pred_fallthru
      _
    // Predicated region
    $region154: #{tpu_custom_call.1} parent=1 // pred_check
      _
    $region155: #{tpu_custom_call.1} parent=1 // pred_check_branch
      %1114 = sbr.rel (0) target = $region157
    $region156: #{tpu_custom_call.1} parent=1 // pred_region
      %1115 = dma.done [#allocation24], 32
    $region157: #{tpu_custom_call.1} parent=1 // pred_fallthru
      _
    // Predicated region
    $region158: #{tpu_custom_call.1} parent=1 // pred_check
      _
    $region159: #{tpu_custom_call.1} parent=1 // pred_check_branch
      %1117 = sbr.rel (0) target = $region161
    $region160: #{tpu_custom_call.1} parent=1 // pred_region
      %1118 = dma.done [#allocation27], 32
    $region161: #{tpu_custom_call.1} parent=1 // pred_fallthru
      _
    %1119 = vsyncpa [#allocation3], 1
    %1120 = vsyncpa [#allocation6], 1
    %1121 = vsyncpa [#allocation9], 1
    %1122 = vsyncpa [#allocation12], 1
    %1123 = vsyncpa [#allocation15], 1
    %1124 = vsyncpa [#allocation4], 1
    %1125 = vsyncpa [#allocation18], 1
    %1126 = vsyncpa [#allocation21], 1
    %1127 = vsyncpa [#allocation24], 1
    %1128 = vsyncpa [#allocation27], 1

</llo_original>
